<compile_context>
chip_gen: v7x
topology: tpu7x:2x2x1
jax: 0.10.0
libtpu: 0.0.40
codegen_flags: <defaults>
</compile_context>

<pallas_src>
import jax
import jax.numpy as jnp
from jax import lax
from jax.experimental import pallas as pl
from jax.experimental.pallas import tpu as pltpu


# ----------------------------------------------------------------------------
# Kernel
# ----------------------------------------------------------------------------
def _make_kernel(depth, T, B, H):
    """Fused kernel: `depth`-layer GRU + self-attention pooling + l2norm."""

    def kernel(*refs):
        # refs layout:
        #   x_ref                               (T*B, Din)  bf16  (time-major flat)
        #   per GRU layer l:
        #     w_ih_t (Din|H, 3H) bf16, w_hh_t (H, 3H) bf16,
        #     b_fused (1, 3H) f32  [= b_ih + b_hh for r,z gates; b_in for n gate]
        #     b_hn    (1, H)  f32  [= b_hn, applied inside r * (.)]
        #   attn: w_a_t (H, A) bf16, b_a (1, A) f32, u_a (1, A) f32, b_u (1,1) f32
        #   out_ref                             (B, H) f32
        #   scratch: hsf_ref                    (T*B, H) f32  (flat hidden states)
        x_ref = refs[0]
        gru = refs[1:1 + 4 * depth]
        w_a_ref, b_a_ref, u_a_ref, b_u_ref = refs[1 + 4 * depth:5 + 4 * depth]
        out_ref = refs[5 + 4 * depth]
        hsf_ref = refs[6 + 4 * depth]

        # ---------------- stacked GRU (batch_first, h0 = zeros) ----------------
        # PyTorch GRU gate order is [r, z, n]:
        #   r = sigma(W_ir x + b_ir + W_hr h + b_hr)
        #   z = sigma(W_iz x + b_iz + W_hz h + b_hz)
        #   n = tanh (W_in x + b_in + r * (W_hn h + b_hn))
        #   h' = (1 - z) * n + z * h
        hs_list = None
        for l in range(depth):
            w_ih_t = gru[4 * l][...]        # (Din|H, 3H) bf16
            w_hh_t = gru[4 * l + 1][...]    # (H, 3H)     bf16
            b_fused = gru[4 * l + 2][...]   # (1, 3H)     f32
            b_hn = gru[4 * l + 3][...]      # (1, H)      f32

            # Hoisted input projection for ALL timesteps: one batched matmul.
            if l == 0:
                x_all = x_ref[...]                               # (T*B, Din) bf16
            else:
                x_all = hsf_ref[...].astype(jnp.bfloat16)        # (T*B, H)
            gx = jnp.dot(x_all, w_ih_t,
                         preferred_element_type=jnp.float32) + b_fused  # (T*B, 3H)
            gx_t = [gx[t * B:(t + 1) * B, :] for t in range(T)]  # static slices

            # Serial recurrence — only h @ W_hh^T stays inside (fully unrolled).
            h = jnp.zeros((B, H), jnp.float32)
            hs_list = []
            for t in range(T):
                gh = jnp.dot(h.astype(jnp.bfloat16), w_hh_t,
                             preferred_element_type=jnp.float32)  # (B, 3H)
                g = gx_t[t]
                r = jax.nn.sigmoid(g[:, :H] + gh[:, :H])
                z = jax.nn.sigmoid(g[:, H:2 * H] + gh[:, H:2 * H])
                n = jnp.tanh(g[:, 2 * H:] + r * (gh[:, 2 * H:] + b_hn))
                h = (1.0 - z) * n + z * h
                hsf_ref[t * B:(t + 1) * B, :] = h                 # static store
                hs_list.append(h)

        # -------------- self-attention scores: U(tanh(W h + b)) + c ------------
        # One batched matmul for all timesteps; score = VPU reduction (no N=1 dot).
        e = jnp.tanh(jnp.dot(hsf_ref[...].astype(jnp.bfloat16), w_a_ref[...],
                             preferred_element_type=jnp.float32) + b_a_ref[...])
        sc = jnp.sum(e * u_a_ref[...], axis=-1, keepdims=True) + b_u_ref[...]  # (T*B, 1)

        # softmax over the time axis (dim=1 in the batch-first PyTorch view),
        # fully unrolled over T with static value slices per timestep.
        sc_t = [sc[t * B:(t + 1) * B, :] for t in range(T)]       # each (B, 1)
        m = sc_t[0]
        for t in range(1, T):
            m = jnp.maximum(m, sc_t[t])
        ex_t = [jnp.exp(s - m) for s in sc_t]
        denom = ex_t[0]
        for t in range(1, T):
            denom = denom + ex_t[t]
        inv_denom = pl.reciprocal(denom, approx=True)             # (B, 1), EUP

        ctx = jnp.zeros((B, H), jnp.float32)
        for t in range(T):
            ctx = ctx + (ex_t[t] * inv_denom) * hs_list[t]        # (B, H)

        # -------------------------- l2normalize (dim=1) -------------------------
        sumsq = jnp.sum(ctx * ctx, axis=1, keepdims=True)
        out_ref[...] = ctx * lax.rsqrt(jnp.maximum(sumsq, 1e-24))

    return kernel


# ----------------------------------------------------------------------------
# Wrapper
# ----------------------------------------------------------------------------
def speech_encoder_top(x, params):
    """Forward pass of SpeechEncoderTop.

    x: (B, T, size_input) float32 (batch-first, like the PyTorch module).
    returns: (B, size) float32, l2-normalized attention-pooled encoding.
    """
    B, T, Din = x.shape
    depth = len(params["gru"])
    assert depth >= 1  # TODO(synk): depth=0 path (attention directly on x) not implemented
    H = params["gru"][0]["w_hh"].shape[1]

    # time-major flat layout (T*B, Din); wrapper-side layout plumbing is free.
    x_flat = jnp.transpose(x.astype(jnp.float32), (1, 0, 2)).reshape(T * B, Din)

    inputs = [x_flat.astype(jnp.bfloat16)]
    for lp in params["gru"]:
        w_ih = lp["w_ih"].astype(jnp.float32)       # (3H, Din|H)
        w_hh = lp["w_hh"].astype(jnp.float32)       # (3H, H)
        b_ih = lp["b_ih"].astype(jnp.float32)       # (3H,)
        b_hh = lp["b_hh"].astype(jnp.float32)       # (3H,)
        b_fused = jnp.concatenate(
            [b_ih[:2 * H] + b_hh[:2 * H], b_ih[2 * H:]]).reshape(1, 3 * H)
        inputs += [
            jnp.transpose(w_ih).astype(jnp.bfloat16),   # (Din|H, 3H)
            jnp.transpose(w_hh).astype(jnp.bfloat16),   # (H, 3H)
            b_fused,                                    # (1, 3H)
            b_hh[2 * H:].reshape(1, H),                 # (1, H)
        ]
    inputs += [
        jnp.transpose(params["attn"]["w"].astype(jnp.float32)).astype(jnp.bfloat16),  # (H, A)
        params["attn"]["b_w"].reshape(1, -1).astype(jnp.float32),                      # (1, A)
        params["attn"]["u"].reshape(1, -1).astype(jnp.float32),                        # (1, A)
        params["attn"]["b_u"].reshape(1, 1).astype(jnp.float32),                       # (1, 1)
    ]

    vmem = pl.BlockSpec(memory_space=pltpu.MemorySpace.VMEM)
    kernel = _make_kernel(depth, T, B, H)

    return pl.pallas_call(
        kernel,
        out_shape=jax.ShapeDtypeStruct((B, H), jnp.float32),
        in_specs=[vmem] * len(inputs),
        out_specs=vmem,
        scratch_shapes=[
            pltpu.VMEM((T * B, H), jnp.float32),   # flat per-timestep hidden states
        ],
    )(*inputs)


# ----------------------------------------------------------------------------
# Deterministic parameter init (PyTorch-like uniform init, synthetic weights)
# ----------------------------------------------------------------------------
def init_params(key, size_input, size, depth, size_attn):
    params = {"gru": [], "attn": {}}
    k_gru = 1.0 / jnp.sqrt(size)
    for l in range(depth):
        in_sz = size_input if l == 0 else size
        key, k1, k2, k3, k4 = jax.random.split(key, 5)
        params["gru"].append({
            "w_ih": jax.random.uniform(k1, (3 * size, in_sz), jnp.float32, -k_gru, k_gru),
            "w_hh": jax.random.uniform(k2, (3 * size, size), jnp.float32, -k_gru, k_gru),
            "b_ih": jax.random.uniform(k3, (3 * size,), jnp.float32, -k_gru, k_gru),
            "b_hh": jax.random.uniform(k4, (3 * size,), jnp.float32, -k_gru, k_gru),
        })
    key, k1, k2, k3, k4 = jax.random.split(key, 5)
    k_w = 1.0 / jnp.sqrt(size)
    k_u = 1.0 / jnp.sqrt(size_attn)
    params["attn"] = {
        "w": jax.random.uniform(k1, (size_attn, size), jnp.float32, -k_w, k_w),
        "b_w": jax.random.uniform(k2, (size_attn,), jnp.float32, -k_w, k_w),
        "u": jax.random.uniform(k3, (1, size_attn), jnp.float32, -k_u, k_u),
        "b_u": jax.random.uniform(k4, (1,), jnp.float32, -k_u, k_u),
    }
    return params


# ----------------------------------------------------------------------------
# Pure-JAX reference (mirrors the PyTorch forward) for a correctness check
# ----------------------------------------------------------------------------
def reference(x, params):
    out = x.astype(jnp.float32)
    for lp in params["gru"]:
        H = lp["w_hh"].shape[1]
        B = out.shape[0]

        def step(h, x_t, lp=lp, H=H):
            gx = x_t @ lp["w_ih"].T + lp["b_ih"]
            gh = h @ lp["w_hh"].T + lp["b_hh"]
            r = jax.nn.sigmoid(gx[:, :H] + gh[:, :H])
            z = jax.nn.sigmoid(gx[:, H:2 * H] + gh[:, H:2 * H])
            n = jnp.tanh(gx[:, 2 * H:] + r * gh[:, 2 * H:])
            h_new = (1.0 - z) * n + z * h
            return h_new, h_new

        h0 = jnp.zeros((B, H), jnp.float32)
        _, hs = lax.scan(step, h0, jnp.transpose(out, (1, 0, 2)))
        out = jnp.transpose(hs, (1, 0, 2))                       # (B, T, H)

    e = jnp.tanh(out @ params["attn"]["w"].T + params["attn"]["b_w"])
    scores = e @ params["attn"]["u"].T + params["attn"]["b_u"]   # (B, T, 1)
    alpha = jax.nn.softmax(scores, axis=1)
    ctx = jnp.sum(alpha * out, axis=1)                           # (B, H)
    nrm = jnp.sqrt(jnp.sum(ctx * ctx, axis=1, keepdims=True))
    return ctx / jnp.maximum(nrm, 1e-12)


# ----------------------------------------------------------------------------
if __name__ == "__main__":
    # Small shapes consistent with the module's forward:
    #   x: (batch=2, seq=8, size_input=32), GRU hidden size=32, attn size=64, depth=1
    B, T, SIZE_INPUT, SIZE, SIZE_ATTN, DEPTH = 2, 8, 32, 32, 64, 1

    root = jax.random.PRNGKey(0)
    kx, kp = jax.random.split(root)
    x = jax.random.normal(kx, (B, T, SIZE_INPUT), jnp.float32)
    params = init_params(kp, SIZE_INPUT, SIZE, DEPTH, SIZE_ATTN)

    out = speech_encoder_top(x, params)
    out = jax.block_until_ready(out)

    ref = jax.block_until_ready(reference(x, params))

    assert out.shape == (B, SIZE), out.shape
    assert bool(jnp.all(jnp.isfinite(out)))
    # output rows are unit-norm after l2normalize
    assert bool(jnp.allclose(jnp.linalg.norm(out, axis=1), 1.0, atol=1e-3))
    assert bool(jnp.allclose(out, ref, atol=2e-2, rtol=2e-2)), (
        "kernel/reference mismatch")

    print("KERNEL_OK")
</pallas_src>

<mosaic_0001>
module attributes {stable_mosaic.version = 11 : i64} {
  func.func @kernel(%arg0: memref<16x32xbf16, #tpu.memory_space<vmem>>, %arg1: memref<32x96xbf16, #tpu.memory_space<vmem>>, %arg2: memref<32x96xbf16, #tpu.memory_space<vmem>>, %arg3: memref<1x96xf32, #tpu.memory_space<vmem>>, %arg4: memref<1x32xf32, #tpu.memory_space<vmem>>, %arg5: memref<32x64xbf16, #tpu.memory_space<vmem>>, %arg6: memref<1x64xf32, #tpu.memory_space<vmem>>, %arg7: memref<1x64xf32, #tpu.memory_space<vmem>>, %arg8: memref<1x1xf32, #tpu.memory_space<vmem>>, %arg9: memref<2x32xf32, #tpu.memory_space<vmem>>, %arg10: memref<16x32xf32, #tpu.memory_space<vmem>>) attributes {dimension_semantics = [], scalar_prefetch = 0 : i64, scratch_operands = 1 : i64, tpu.core_type = #tpu.core_type<tc>} {
    %c0 = arith.constant 0 : index
    %c0_0 = arith.constant 0 : index
    %0 = vector.load %arg1[%c0, %c0_0] : memref<32x96xbf16, #tpu.memory_space<vmem>>, vector<32x96xbf16>
    %c0_1 = arith.constant 0 : index
    %c0_2 = arith.constant 0 : index
    %1 = vector.load %arg2[%c0_1, %c0_2] : memref<32x96xbf16, #tpu.memory_space<vmem>>, vector<32x96xbf16>
    %c0_3 = arith.constant 0 : index
    %c0_4 = arith.constant 0 : index
    %2 = vector.load %arg3[%c0_3, %c0_4] : memref<1x96xf32, #tpu.memory_space<vmem>>, vector<1x96xf32>
    %c0_5 = arith.constant 0 : index
    %c0_6 = arith.constant 0 : index
    %3 = vector.load %arg4[%c0_5, %c0_6] : memref<1x32xf32, #tpu.memory_space<vmem>>, vector<1x32xf32>
    %c0_7 = arith.constant 0 : index
    %c0_8 = arith.constant 0 : index
    %4 = vector.load %arg0[%c0_7, %c0_8] : memref<16x32xbf16, #tpu.memory_space<vmem>>, vector<16x32xbf16>
    %cst = arith.constant dense<0.000000e+00> : vector<16x96xf32>
    %5 = tpu.matmul %4, %0, %cst {dimension_numbers = #tpu.dot_dimension_numbers<[1], [0], [0], [1], [0, 0, 1, 1], [], []>} : vector<16x32xbf16>, vector<32x96xbf16>, vector<16x96xf32> -> vector<16x96xf32>
    %6 = vector.broadcast %2 : vector<1x96xf32> to vector<16x96xf32>
    %7 = arith.addf %5, %6 : vector<16x96xf32>
    %8 = vector.extract_strided_slice %7 {offsets = [0, 0], sizes = [2, 96], strides = [1, 1]} : vector<16x96xf32> to vector<2x96xf32>
    %9 = vector.extract_strided_slice %7 {offsets = [2, 0], sizes = [2, 96], strides = [1, 1]} : vector<16x96xf32> to vector<2x96xf32>
    %10 = vector.extract_strided_slice %7 {offsets = [4, 0], sizes = [2, 96], strides = [1, 1]} : vector<16x96xf32> to vector<2x96xf32>
    %11 = vector.extract_strided_slice %7 {offsets = [6, 0], sizes = [2, 96], strides = [1, 1]} : vector<16x96xf32> to vector<2x96xf32>
    %12 = vector.extract_strided_slice %7 {offsets = [8, 0], sizes = [2, 96], strides = [1, 1]} : vector<16x96xf32> to vector<2x96xf32>
    %13 = vector.extract_strided_slice %7 {offsets = [10, 0], sizes = [2, 96], strides = [1, 1]} : vector<16x96xf32> to vector<2x96xf32>
    %14 = vector.extract_strided_slice %7 {offsets = [12, 0], sizes = [2, 96], strides = [1, 1]} : vector<16x96xf32> to vector<2x96xf32>
    %15 = vector.extract_strided_slice %7 {offsets = [14, 0], sizes = [2, 96], strides = [1, 1]} : vector<16x96xf32> to vector<2x96xf32>
    %cst_9 = arith.constant 0.000000e+00 : f32
    %16 = vector.broadcast %cst_9 : f32 to vector<2x32xf32>
    %17 = arith.truncf %16 : vector<2x32xf32> to vector<2x32xbf16>
    %cst_10 = arith.constant dense<0.000000e+00> : vector<2x96xf32>
    %18 = tpu.matmul %17, %1, %cst_10 {dimension_numbers = #tpu.dot_dimension_numbers<[1], [0], [0], [1], [0, 0, 1, 1], [], []>} : vector<2x32xbf16>, vector<32x96xbf16>, vector<2x96xf32> -> vector<2x96xf32>
    %19 = vector.extract_strided_slice %8 {offsets = [0, 0], sizes = [2, 32], strides = [1, 1]} : vector<2x96xf32> to vector<2x32xf32>
    %20 = vector.extract_strided_slice %18 {offsets = [0, 0], sizes = [2, 32], strides = [1, 1]} : vector<2x96xf32> to vector<2x32xf32>
    %21 = arith.addf %19, %20 : vector<2x32xf32>
    %22 = arith.negf %21 : vector<2x32xf32>
    %23 = math.exp %22 : vector<2x32xf32>
    %cst_11 = arith.constant 1.000000e+00 : f32
    %24 = vector.broadcast %cst_11 : f32 to vector<2x32xf32>
    %25 = arith.addf %24, %23 : vector<2x32xf32>
    %26 = arith.divf %24, %25 : vector<2x32xf32>
    %27 = vector.extract_strided_slice %8 {offsets = [0, 32], sizes = [2, 32], strides = [1, 1]} : vector<2x96xf32> to vector<2x32xf32>
    %28 = vector.extract_strided_slice %18 {offsets = [0, 32], sizes = [2, 32], strides = [1, 1]} : vector<2x96xf32> to vector<2x32xf32>
    %29 = arith.addf %27, %28 : vector<2x32xf32>
    %30 = arith.negf %29 : vector<2x32xf32>
    %31 = math.exp %30 : vector<2x32xf32>
    %cst_12 = arith.constant 1.000000e+00 : f32
    %32 = vector.broadcast %cst_12 : f32 to vector<2x32xf32>
    %33 = arith.addf %32, %31 : vector<2x32xf32>
    %34 = arith.divf %32, %33 : vector<2x32xf32>
    %35 = vector.extract_strided_slice %8 {offsets = [0, 64], sizes = [2, 32], strides = [1, 1]} : vector<2x96xf32> to vector<2x32xf32>
    %36 = vector.extract_strided_slice %18 {offsets = [0, 64], sizes = [2, 32], strides = [1, 1]} : vector<2x96xf32> to vector<2x32xf32>
    %37 = vector.broadcast %3 : vector<1x32xf32> to vector<2x32xf32>
    %38 = arith.addf %36, %37 : vector<2x32xf32>
    %39 = arith.mulf %26, %38 : vector<2x32xf32>
    %40 = arith.addf %35, %39 : vector<2x32xf32>
    %41 = math.tanh %40 : vector<2x32xf32>
    %cst_13 = arith.constant 1.000000e+00 : f32
    %42 = vector.broadcast %cst_13 : f32 to vector<2x32xf32>
    %43 = arith.subf %42, %34 : vector<2x32xf32>
    %44 = arith.mulf %43, %41 : vector<2x32xf32>
    %45 = arith.mulf %34, %16 : vector<2x32xf32>
    %46 = arith.addf %44, %45 : vector<2x32xf32>
    %c0_14 = arith.constant 0 : index
    %c0_15 = arith.constant 0 : index
    %47 = vector.load %arg10[%c0_14, %c0_15] : memref<16x32xf32, #tpu.memory_space<vmem>>, vector<2x32xf32>
    tpu.vector_store %arg10[%c0_14, %c0_15], %46 {strides = array<i32>} : memref<16x32xf32, #tpu.memory_space<vmem>>, vector<2x32xf32>,
    %48 = arith.truncf %46 : vector<2x32xf32> to vector<2x32xbf16>
    %cst_16 = arith.constant dense<0.000000e+00> : vector<2x96xf32>
    %49 = tpu.matmul %48, %1, %cst_16 {dimension_numbers = #tpu.dot_dimension_numbers<[1], [0], [0], [1], [0, 0, 1, 1], [], []>} : vector<2x32xbf16>, vector<32x96xbf16>, vector<2x96xf32> -> vector<2x96xf32>
    %50 = vector.extract_strided_slice %9 {offsets = [0, 0], sizes = [2, 32], strides = [1, 1]} : vector<2x96xf32> to vector<2x32xf32>
    %51 = vector.extract_strided_slice %49 {offsets = [0, 0], sizes = [2, 32], strides = [1, 1]} : vector<2x96xf32> to vector<2x32xf32>
    %52 = arith.addf %50, %51 : vector<2x32xf32>
    %53 = arith.negf %52 : vector<2x32xf32>
    %54 = math.exp %53 : vector<2x32xf32>
    %cst_17 = arith.constant 1.000000e+00 : f32
    %55 = vector.broadcast %cst_17 : f32 to vector<2x32xf32>
    %56 = arith.addf %55, %54 : vector<2x32xf32>
    %57 = arith.divf %55, %56 : vector<2x32xf32>
    %58 = vector.extract_strided_slice %9 {offsets = [0, 32], sizes = [2, 32], strides = [1, 1]} : vector<2x96xf32> to vector<2x32xf32>
    %59 = vector.extract_strided_slice %49 {offsets = [0, 32], sizes = [2, 32], strides = [1, 1]} : vector<2x96xf32> to vector<2x32xf32>
    %60 = arith.addf %58, %59 : vector<2x32xf32>
    %61 = arith.negf %60 : vector<2x32xf32>
    %62 = math.exp %61 : vector<2x32xf32>
    %cst_18 = arith.constant 1.000000e+00 : f32
    %63 = vector.broadcast %cst_18 : f32 to vector<2x32xf32>
    %64 = arith.addf %63, %62 : vector<2x32xf32>
    %65 = arith.divf %63, %64 : vector<2x32xf32>
    %66 = vector.extract_strided_slice %9 {offsets = [0, 64], sizes = [2, 32], strides = [1, 1]} : vector<2x96xf32> to vector<2x32xf32>
    %67 = vector.extract_strided_slice %49 {offsets = [0, 64], sizes = [2, 32], strides = [1, 1]} : vector<2x96xf32> to vector<2x32xf32>
    %68 = vector.broadcast %3 : vector<1x32xf32> to vector<2x32xf32>
    %69 = arith.addf %67, %68 : vector<2x32xf32>
    %70 = arith.mulf %57, %69 : vector<2x32xf32>
    %71 = arith.addf %66, %70 : vector<2x32xf32>
    %72 = math.tanh %71 : vector<2x32xf32>
    %cst_19 = arith.constant 1.000000e+00 : f32
    %73 = vector.broadcast %cst_19 : f32 to vector<2x32xf32>
    %74 = arith.subf %73, %65 : vector<2x32xf32>
    %75 = arith.mulf %74, %72 : vector<2x32xf32>
    %76 = arith.mulf %65, %46 : vector<2x32xf32>
    %77 = arith.addf %75, %76 : vector<2x32xf32>
    %c2 = arith.constant 2 : index
    %c0_20 = arith.constant 0 : index
    %78 = vector.load %arg10[%c2, %c0_20] : memref<16x32xf32, #tpu.memory_space<vmem>>, vector<2x32xf32>
    tpu.vector_store %arg10[%c2, %c0_20], %77 {strides = array<i32>} : memref<16x32xf32, #tpu.memory_space<vmem>>, vector<2x32xf32>,
    %79 = arith.truncf %77 : vector<2x32xf32> to vector<2x32xbf16>
    %cst_21 = arith.constant dense<0.000000e+00> : vector<2x96xf32>
    %80 = tpu.matmul %79, %1, %cst_21 {dimension_numbers = #tpu.dot_dimension_numbers<[1], [0], [0], [1], [0, 0, 1, 1], [], []>} : vector<2x32xbf16>, vector<32x96xbf16>, vector<2x96xf32> -> vector<2x96xf32>
    %81 = vector.extract_strided_slice %10 {offsets = [0, 0], sizes = [2, 32], strides = [1, 1]} : vector<2x96xf32> to vector<2x32xf32>
    %82 = vector.extract_strided_slice %80 {offsets = [0, 0], sizes = [2, 32], strides = [1, 1]} : vector<2x96xf32> to vector<2x32xf32>
    %83 = arith.addf %81, %82 : vector<2x32xf32>
    %84 = arith.negf %83 : vector<2x32xf32>
    %85 = math.exp %84 : vector<2x32xf32>
    %cst_22 = arith.constant 1.000000e+00 : f32
    %86 = vector.broadcast %cst_22 : f32 to vector<2x32xf32>
    %87 = arith.addf %86, %85 : vector<2x32xf32>
    %88 = arith.divf %86, %87 : vector<2x32xf32>
    %89 = vector.extract_strided_slice %10 {offsets = [0, 32], sizes = [2, 32], strides = [1, 1]} : vector<2x96xf32> to vector<2x32xf32>
    %90 = vector.extract_strided_slice %80 {offsets = [0, 32], sizes = [2, 32], strides = [1, 1]} : vector<2x96xf32> to vector<2x32xf32>
    %91 = arith.addf %89, %90 : vector<2x32xf32>
    %92 = arith.negf %91 : vector<2x32xf32>
    %93 = math.exp %92 : vector<2x32xf32>
    %cst_23 = arith.constant 1.000000e+00 : f32
    %94 = vector.broadcast %cst_23 : f32 to vector<2x32xf32>
    %95 = arith.addf %94, %93 : vector<2x32xf32>
    %96 = arith.divf %94, %95 : vector<2x32xf32>
    %97 = vector.extract_strided_slice %10 {offsets = [0, 64], sizes = [2, 32], strides = [1, 1]} : vector<2x96xf32> to vector<2x32xf32>
    %98 = vector.extract_strided_slice %80 {offsets = [0, 64], sizes = [2, 32], strides = [1, 1]} : vector<2x96xf32> to vector<2x32xf32>
    %99 = vector.broadcast %3 : vector<1x32xf32> to vector<2x32xf32>
    %100 = arith.addf %98, %99 : vector<2x32xf32>
    %101 = arith.mulf %88, %100 : vector<2x32xf32>
    %102 = arith.addf %97, %101 : vector<2x32xf32>
    %103 = math.tanh %102 : vector<2x32xf32>
    %cst_24 = arith.constant 1.000000e+00 : f32
    %104 = vector.broadcast %cst_24 : f32 to vector<2x32xf32>
    %105 = arith.subf %104, %96 : vector<2x32xf32>
    %106 = arith.mulf %105, %103 : vector<2x32xf32>
    %107 = arith.mulf %96, %77 : vector<2x32xf32>
    %108 = arith.addf %106, %107 : vector<2x32xf32>
    %c4 = arith.constant 4 : index
    %c0_25 = arith.constant 0 : index
    %109 = vector.load %arg10[%c4, %c0_25] : memref<16x32xf32, #tpu.memory_space<vmem>>, vector<2x32xf32>
    tpu.vector_store %arg10[%c4, %c0_25], %108 {strides = array<i32>} : memref<16x32xf32, #tpu.memory_space<vmem>>, vector<2x32xf32>,
    %110 = arith.truncf %108 : vector<2x32xf32> to vector<2x32xbf16>
    %cst_26 = arith.constant dense<0.000000e+00> : vector<2x96xf32>
    %111 = tpu.matmul %110, %1, %cst_26 {dimension_numbers = #tpu.dot_dimension_numbers<[1], [0], [0], [1], [0, 0, 1, 1], [], []>} : vector<2x32xbf16>, vector<32x96xbf16>, vector<2x96xf32> -> vector<2x96xf32>
    %112 = vector.extract_strided_slice %11 {offsets = [0, 0], sizes = [2, 32], strides = [1, 1]} : vector<2x96xf32> to vector<2x32xf32>
    %113 = vector.extract_strided_slice %111 {offsets = [0, 0], sizes = [2, 32], strides = [1, 1]} : vector<2x96xf32> to vector<2x32xf32>
    %114 = arith.addf %112, %113 : vector<2x32xf32>
    %115 = arith.negf %114 : vector<2x32xf32>
    %116 = math.exp %115 : vector<2x32xf32>
    %cst_27 = arith.constant 1.000000e+00 : f32
    %117 = vector.broadcast %cst_27 : f32 to vector<2x32xf32>
    %118 = arith.addf %117, %116 : vector<2x32xf32>
    %119 = arith.divf %117, %118 : vector<2x32xf32>
    %120 = vector.extract_strided_slice %11 {offsets = [0, 32], sizes = [2, 32], strides = [1, 1]} : vector<2x96xf32> to vector<2x32xf32>
    %121 = vector.extract_strided_slice %111 {offsets = [0, 32], sizes = [2, 32], strides = [1, 1]} : vector<2x96xf32> to vector<2x32xf32>
    %122 = arith.addf %120, %121 : vector<2x32xf32>
    %123 = arith.negf %122 : vector<2x32xf32>
    %124 = math.exp %123 : vector<2x32xf32>
    %cst_28 = arith.constant 1.000000e+00 : f32
    %125 = vector.broadcast %cst_28 : f32 to vector<2x32xf32>
    %126 = arith.addf %125, %124 : vector<2x32xf32>
    %127 = arith.divf %125, %126 : vector<2x32xf32>
    %128 = vector.extract_strided_slice %11 {offsets = [0, 64], sizes = [2, 32], strides = [1, 1]} : vector<2x96xf32> to vector<2x32xf32>
    %129 = vector.extract_strided_slice %111 {offsets = [0, 64], sizes = [2, 32], strides = [1, 1]} : vector<2x96xf32> to vector<2x32xf32>
    %130 = vector.broadcast %3 : vector<1x32xf32> to vector<2x32xf32>
    %131 = arith.addf %129, %130 : vector<2x32xf32>
    %132 = arith.mulf %119, %131 : vector<2x32xf32>
    %133 = arith.addf %128, %132 : vector<2x32xf32>
    %134 = math.tanh %133 : vector<2x32xf32>
    %cst_29 = arith.constant 1.000000e+00 : f32
    %135 = vector.broadcast %cst_29 : f32 to vector<2x32xf32>
    %136 = arith.subf %135, %127 : vector<2x32xf32>
    %137 = arith.mulf %136, %134 : vector<2x32xf32>
    %138 = arith.mulf %127, %108 : vector<2x32xf32>
    %139 = arith.addf %137, %138 : vector<2x32xf32>
    %c6 = arith.constant 6 : index
    %c0_30 = arith.constant 0 : index
    %140 = vector.load %arg10[%c6, %c0_30] : memref<16x32xf32, #tpu.memory_space<vmem>>, vector<2x32xf32>
    tpu.vector_store %arg10[%c6, %c0_30], %139 {strides = array<i32>} : memref<16x32xf32, #tpu.memory_space<vmem>>, vector<2x32xf32>,
    %141 = arith.truncf %139 : vector<2x32xf32> to vector<2x32xbf16>
    %cst_31 = arith.constant dense<0.000000e+00> : vector<2x96xf32>
    %142 = tpu.matmul %141, %1, %cst_31 {dimension_numbers = #tpu.dot_dimension_numbers<[1], [0], [0], [1], [0, 0, 1, 1], [], []>} : vector<2x32xbf16>, vector<32x96xbf16>, vector<2x96xf32> -> vector<2x96xf32>
    %143 = vector.extract_strided_slice %12 {offsets = [0, 0], sizes = [2, 32], strides = [1, 1]} : vector<2x96xf32> to vector<2x32xf32>
    %144 = vector.extract_strided_slice %142 {offsets = [0, 0], sizes = [2, 32], strides = [1, 1]} : vector<2x96xf32> to vector<2x32xf32>
    %145 = arith.addf %143, %144 : vector<2x32xf32>
    %146 = arith.negf %145 : vector<2x32xf32>
    %147 = math.exp %146 : vector<2x32xf32>
    %cst_32 = arith.constant 1.000000e+00 : f32
    %148 = vector.broadcast %cst_32 : f32 to vector<2x32xf32>
    %149 = arith.addf %148, %147 : vector<2x32xf32>
    %150 = arith.divf %148, %149 : vector<2x32xf32>
    %151 = vector.extract_strided_slice %12 {offsets = [0, 32], sizes = [2, 32], strides = [1, 1]} : vector<2x96xf32> to vector<2x32xf32>
    %152 = vector.extract_strided_slice %142 {offsets = [0, 32], sizes = [2, 32], strides = [1, 1]} : vector<2x96xf32> to vector<2x32xf32>
    %153 = arith.addf %151, %152 : vector<2x32xf32>
    %154 = arith.negf %153 : vector<2x32xf32>
    %155 = math.exp %154 : vector<2x32xf32>
    %cst_33 = arith.constant 1.000000e+00 : f32
    %156 = vector.broadcast %cst_33 : f32 to vector<2x32xf32>
    %157 = arith.addf %156, %155 : vector<2x32xf32>
    %158 = arith.divf %156, %157 : vector<2x32xf32>
    %159 = vector.extract_strided_slice %12 {offsets = [0, 64], sizes = [2, 32], strides = [1, 1]} : vector<2x96xf32> to vector<2x32xf32>
    %160 = vector.extract_strided_slice %142 {offsets = [0, 64], sizes = [2, 32], strides = [1, 1]} : vector<2x96xf32> to vector<2x32xf32>
    %161 = vector.broadcast %3 : vector<1x32xf32> to vector<2x32xf32>
    %162 = arith.addf %160, %161 : vector<2x32xf32>
    %163 = arith.mulf %150, %162 : vector<2x32xf32>
    %164 = arith.addf %159, %163 : vector<2x32xf32>
    %165 = math.tanh %164 : vector<2x32xf32>
    %cst_34 = arith.constant 1.000000e+00 : f32
    %166 = vector.broadcast %cst_34 : f32 to vector<2x32xf32>
    %167 = arith.subf %166, %158 : vector<2x32xf32>
    %168 = arith.mulf %167, %165 : vector<2x32xf32>
    %169 = arith.mulf %158, %139 : vector<2x32xf32>
    %170 = arith.addf %168, %169 : vector<2x32xf32>
    %c8 = arith.constant 8 : index
    %c0_35 = arith.constant 0 : index
    %171 = vector.load %arg10[%c8, %c0_35] : memref<16x32xf32, #tpu.memory_space<vmem>>, vector<2x32xf32>
    tpu.vector_store %arg10[%c8, %c0_35], %170 {strides = array<i32>} : memref<16x32xf32, #tpu.memory_space<vmem>>, vector<2x32xf32>,
    %172 = arith.truncf %170 : vector<2x32xf32> to vector<2x32xbf16>
    %cst_36 = arith.constant dense<0.000000e+00> : vector<2x96xf32>
    %173 = tpu.matmul %172, %1, %cst_36 {dimension_numbers = #tpu.dot_dimension_numbers<[1], [0], [0], [1], [0, 0, 1, 1], [], []>} : vector<2x32xbf16>, vector<32x96xbf16>, vector<2x96xf32> -> vector<2x96xf32>
    %174 = vector.extract_strided_slice %13 {offsets = [0, 0], sizes = [2, 32], strides = [1, 1]} : vector<2x96xf32> to vector<2x32xf32>
    %175 = vector.extract_strided_slice %173 {offsets = [0, 0], sizes = [2, 32], strides = [1, 1]} : vector<2x96xf32> to vector<2x32xf32>
    %176 = arith.addf %174, %175 : vector<2x32xf32>
    %177 = arith.negf %176 : vector<2x32xf32>
    %178 = math.exp %177 : vector<2x32xf32>
    %cst_37 = arith.constant 1.000000e+00 : f32
    %179 = vector.broadcast %cst_37 : f32 to vector<2x32xf32>
    %180 = arith.addf %179, %178 : vector<2x32xf32>
    %181 = arith.divf %179, %180 : vector<2x32xf32>
    %182 = vector.extract_strided_slice %13 {offsets = [0, 32], sizes = [2, 32], strides = [1, 1]} : vector<2x96xf32> to vector<2x32xf32>
    %183 = vector.extract_strided_slice %173 {offsets = [0, 32], sizes = [2, 32], strides = [1, 1]} : vector<2x96xf32> to vector<2x32xf32>
    %184 = arith.addf %182, %183 : vector<2x32xf32>
    %185 = arith.negf %184 : vector<2x32xf32>
    %186 = math.exp %185 : vector<2x32xf32>
    %cst_38 = arith.constant 1.000000e+00 : f32
    %187 = vector.broadcast %cst_38 : f32 to vector<2x32xf32>
    %188 = arith.addf %187, %186 : vector<2x32xf32>
    %189 = arith.divf %187, %188 : vector<2x32xf32>
    %190 = vector.extract_strided_slice %13 {offsets = [0, 64], sizes = [2, 32], strides = [1, 1]} : vector<2x96xf32> to vector<2x32xf32>
    %191 = vector.extract_strided_slice %173 {offsets = [0, 64], sizes = [2, 32], strides = [1, 1]} : vector<2x96xf32> to vector<2x32xf32>
    %192 = vector.broadcast %3 : vector<1x32xf32> to vector<2x32xf32>
    %193 = arith.addf %191, %192 : vector<2x32xf32>
    %194 = arith.mulf %181, %193 : vector<2x32xf32>
    %195 = arith.addf %190, %194 : vector<2x32xf32>
    %196 = math.tanh %195 : vector<2x32xf32>
    %cst_39 = arith.constant 1.000000e+00 : f32
    %197 = vector.broadcast %cst_39 : f32 to vector<2x32xf32>
    %198 = arith.subf %197, %189 : vector<2x32xf32>
    %199 = arith.mulf %198, %196 : vector<2x32xf32>
    %200 = arith.mulf %189, %170 : vector<2x32xf32>
    %201 = arith.addf %199, %200 : vector<2x32xf32>
    %c10 = arith.constant 10 : index
    %c0_40 = arith.constant 0 : index
    %202 = vector.load %arg10[%c10, %c0_40] : memref<16x32xf32, #tpu.memory_space<vmem>>, vector<2x32xf32>
    tpu.vector_store %arg10[%c10, %c0_40], %201 {strides = array<i32>} : memref<16x32xf32, #tpu.memory_space<vmem>>, vector<2x32xf32>,
    %203 = arith.truncf %201 : vector<2x32xf32> to vector<2x32xbf16>
    %cst_41 = arith.constant dense<0.000000e+00> : vector<2x96xf32>
    %204 = tpu.matmul %203, %1, %cst_41 {dimension_numbers = #tpu.dot_dimension_numbers<[1], [0], [0], [1], [0, 0, 1, 1], [], []>} : vector<2x32xbf16>, vector<32x96xbf16>, vector<2x96xf32> -> vector<2x96xf32>
    %205 = vector.extract_strided_slice %14 {offsets = [0, 0], sizes = [2, 32], strides = [1, 1]} : vector<2x96xf32> to vector<2x32xf32>
    %206 = vector.extract_strided_slice %204 {offsets = [0, 0], sizes = [2, 32], strides = [1, 1]} : vector<2x96xf32> to vector<2x32xf32>
    %207 = arith.addf %205, %206 : vector<2x32xf32>
    %208 = arith.negf %207 : vector<2x32xf32>
    %209 = math.exp %208 : vector<2x32xf32>
    %cst_42 = arith.constant 1.000000e+00 : f32
    %210 = vector.broadcast %cst_42 : f32 to vector<2x32xf32>
    %211 = arith.addf %210, %209 : vector<2x32xf32>
    %212 = arith.divf %210, %211 : vector<2x32xf32>
    %213 = vector.extract_strided_slice %14 {offsets = [0, 32], sizes = [2, 32], strides = [1, 1]} : vector<2x96xf32> to vector<2x32xf32>
    %214 = vector.extract_strided_slice %204 {offsets = [0, 32], sizes = [2, 32], strides = [1, 1]} : vector<2x96xf32> to vector<2x32xf32>
    %215 = arith.addf %213, %214 : vector<2x32xf32>
    %216 = arith.negf %215 : vector<2x32xf32>
    %217 = math.exp %216 : vector<2x32xf32>
    %cst_43 = arith.constant 1.000000e+00 : f32
    %218 = vector.broadcast %cst_43 : f32 to vector<2x32xf32>
    %219 = arith.addf %218, %217 : vector<2x32xf32>
    %220 = arith.divf %218, %219 : vector<2x32xf32>
    %221 = vector.extract_strided_slice %14 {offsets = [0, 64], sizes = [2, 32], strides = [1, 1]} : vector<2x96xf32> to vector<2x32xf32>
    %222 = vector.extract_strided_slice %204 {offsets = [0, 64], sizes = [2, 32], strides = [1, 1]} : vector<2x96xf32> to vector<2x32xf32>
    %223 = vector.broadcast %3 : vector<1x32xf32> to vector<2x32xf32>
    %224 = arith.addf %222, %223 : vector<2x32xf32>
    %225 = arith.mulf %212, %224 : vector<2x32xf32>
    %226 = arith.addf %221, %225 : vector<2x32xf32>
    %227 = math.tanh %226 : vector<2x32xf32>
    %cst_44 = arith.constant 1.000000e+00 : f32
    %228 = vector.broadcast %cst_44 : f32 to vector<2x32xf32>
    %229 = arith.subf %228, %220 : vector<2x32xf32>
    %230 = arith.mulf %229, %227 : vector<2x32xf32>
    %231 = arith.mulf %220, %201 : vector<2x32xf32>
    %232 = arith.addf %230, %231 : vector<2x32xf32>
    %c12 = arith.constant 12 : index
    %c0_45 = arith.constant 0 : index
    %233 = vector.load %arg10[%c12, %c0_45] : memref<16x32xf32, #tpu.memory_space<vmem>>, vector<2x32xf32>
    tpu.vector_store %arg10[%c12, %c0_45], %232 {strides = array<i32>} : memref<16x32xf32, #tpu.memory_space<vmem>>, vector<2x32xf32>,
    %234 = arith.truncf %232 : vector<2x32xf32> to vector<2x32xbf16>
    %cst_46 = arith.constant dense<0.000000e+00> : vector<2x96xf32>
    %235 = tpu.matmul %234, %1, %cst_46 {dimension_numbers = #tpu.dot_dimension_numbers<[1], [0], [0], [1], [0, 0, 1, 1], [], []>} : vector<2x32xbf16>, vector<32x96xbf16>, vector<2x96xf32> -> vector<2x96xf32>
    %236 = vector.extract_strided_slice %15 {offsets = [0, 0], sizes = [2, 32], strides = [1, 1]} : vector<2x96xf32> to vector<2x32xf32>
    %237 = vector.extract_strided_slice %235 {offsets = [0, 0], sizes = [2, 32], strides = [1, 1]} : vector<2x96xf32> to vector<2x32xf32>
    %238 = arith.addf %236, %237 : vector<2x32xf32>
    %239 = arith.negf %238 : vector<2x32xf32>
    %240 = math.exp %239 : vector<2x32xf32>
    %cst_47 = arith.constant 1.000000e+00 : f32
    %241 = vector.broadcast %cst_47 : f32 to vector<2x32xf32>
    %242 = arith.addf %241, %240 : vector<2x32xf32>
    %243 = arith.divf %241, %242 : vector<2x32xf32>
    %244 = vector.extract_strided_slice %15 {offsets = [0, 32], sizes = [2, 32], strides = [1, 1]} : vector<2x96xf32> to vector<2x32xf32>
    %245 = vector.extract_strided_slice %235 {offsets = [0, 32], sizes = [2, 32], strides = [1, 1]} : vector<2x96xf32> to vector<2x32xf32>
    %246 = arith.addf %244, %245 : vector<2x32xf32>
    %247 = arith.negf %246 : vector<2x32xf32>
    %248 = math.exp %247 : vector<2x32xf32>
    %cst_48 = arith.constant 1.000000e+00 : f32
    %249 = vector.broadcast %cst_48 : f32 to vector<2x32xf32>
    %250 = arith.addf %249, %248 : vector<2x32xf32>
    %251 = arith.divf %249, %250 : vector<2x32xf32>
    %252 = vector.extract_strided_slice %15 {offsets = [0, 64], sizes = [2, 32], strides = [1, 1]} : vector<2x96xf32> to vector<2x32xf32>
    %253 = vector.extract_strided_slice %235 {offsets = [0, 64], sizes = [2, 32], strides = [1, 1]} : vector<2x96xf32> to vector<2x32xf32>
    %254 = vector.broadcast %3 : vector<1x32xf32> to vector<2x32xf32>
    %255 = arith.addf %253, %254 : vector<2x32xf32>
    %256 = arith.mulf %243, %255 : vector<2x32xf32>
    %257 = arith.addf %252, %256 : vector<2x32xf32>
    %258 = math.tanh %257 : vector<2x32xf32>
    %cst_49 = arith.constant 1.000000e+00 : f32
    %259 = vector.broadcast %cst_49 : f32 to vector<2x32xf32>
    %260 = arith.subf %259, %251 : vector<2x32xf32>
    %261 = arith.mulf %260, %258 : vector<2x32xf32>
    %262 = arith.mulf %251, %232 : vector<2x32xf32>
    %263 = arith.addf %261, %262 : vector<2x32xf32>
    %c14 = arith.constant 14 : index
    %c0_50 = arith.constant 0 : index
    %264 = vector.load %arg10[%c14, %c0_50] : memref<16x32xf32, #tpu.memory_space<vmem>>, vector<2x32xf32>
    tpu.vector_store %arg10[%c14, %c0_50], %263 {strides = array<i32>} : memref<16x32xf32, #tpu.memory_space<vmem>>, vector<2x32xf32>,
    %c0_51 = arith.constant 0 : index
    %c0_52 = arith.constant 0 : index
    %265 = vector.load %arg10[%c0_51, %c0_52] : memref<16x32xf32, #tpu.memory_space<vmem>>, vector<16x32xf32>
    %266 = arith.truncf %265 : vector<16x32xf32> to vector<16x32xbf16>
    %c0_53 = arith.constant 0 : index
    %c0_54 = arith.constant 0 : index
    %267 = vector.load %arg5[%c0_53, %c0_54] : memref<32x64xbf16, #tpu.memory_space<vmem>>, vector<32x64xbf16>
    %cst_55 = arith.constant dense<0.000000e+00> : vector<16x64xf32>
    %268 = tpu.matmul %266, %267, %cst_55 {dimension_numbers = #tpu.dot_dimension_numbers<[1], [0], [0], [1], [0, 0, 1, 1], [], []>} : vector<16x32xbf16>, vector<32x64xbf16>, vector<16x64xf32> -> vector<16x64xf32>
    %c0_56 = arith.constant 0 : index
    %c0_57 = arith.constant 0 : index
    %269 = vector.load %arg6[%c0_56, %c0_57] : memref<1x64xf32, #tpu.memory_space<vmem>>, vector<1x64xf32>
    %270 = vector.broadcast %269 : vector<1x64xf32> to vector<16x64xf32>
    %271 = arith.addf %268, %270 : vector<16x64xf32>
    %272 = math.tanh %271 : vector<16x64xf32>
    %c0_58 = arith.constant 0 : index
    %c0_59 = arith.constant 0 : index
    %273 = vector.load %arg7[%c0_58, %c0_59] : memref<1x64xf32, #tpu.memory_space<vmem>>, vector<1x64xf32>
    %274 = vector.broadcast %273 : vector<1x64xf32> to vector<16x64xf32>
    %275 = arith.mulf %272, %274 : vector<16x64xf32>
    %cst_60 = arith.constant dense<0.000000e+00> : vector<16xf32>
    %276 = vector.multi_reduction <add>, %275, %cst_60 [1] : vector<16x64xf32> to vector<16xf32>
    %277 = vector.shape_cast %276 : vector<16xf32> to vector<16x1xf32>
    %c0_61 = arith.constant 0 : index
    %c0_62 = arith.constant 0 : index
    %278 = vector.load %arg8[%c0_61, %c0_62] : memref<1x1xf32, #tpu.memory_space<vmem>>, vector<1x1xf32>
    %279 = vector.broadcast %278 : vector<1x1xf32> to vector<16x1xf32>
    %280 = arith.addf %277, %279 : vector<16x1xf32>
    %281 = vector.extract_strided_slice %280 {offsets = [0, 0], sizes = [2, 1], strides = [1, 1]} : vector<16x1xf32> to vector<2x1xf32>
    %282 = vector.extract_strided_slice %280 {offsets = [2, 0], sizes = [2, 1], strides = [1, 1]} : vector<16x1xf32> to vector<2x1xf32>
    %283 = vector.extract_strided_slice %280 {offsets = [4, 0], sizes = [2, 1], strides = [1, 1]} : vector<16x1xf32> to vector<2x1xf32>
    %284 = vector.extract_strided_slice %280 {offsets = [6, 0], sizes = [2, 1], strides = [1, 1]} : vector<16x1xf32> to vector<2x1xf32>
    %285 = vector.extract_strided_slice %280 {offsets = [8, 0], sizes = [2, 1], strides = [1, 1]} : vector<16x1xf32> to vector<2x1xf32>
    %286 = vector.extract_strided_slice %280 {offsets = [10, 0], sizes = [2, 1], strides = [1, 1]} : vector<16x1xf32> to vector<2x1xf32>
    %287 = vector.extract_strided_slice %280 {offsets = [12, 0], sizes = [2, 1], strides = [1, 1]} : vector<16x1xf32> to vector<2x1xf32>
    %288 = vector.extract_strided_slice %280 {offsets = [14, 0], sizes = [2, 1], strides = [1, 1]} : vector<16x1xf32> to vector<2x1xf32>
    %289 = arith.maximumf %281, %282 : vector<2x1xf32>
    %290 = arith.maximumf %289, %283 : vector<2x1xf32>
    %291 = arith.maximumf %290, %284 : vector<2x1xf32>
    %292 = arith.maximumf %291, %285 : vector<2x1xf32>
    %293 = arith.maximumf %292, %286 : vector<2x1xf32>
    %294 = arith.maximumf %293, %287 : vector<2x1xf32>
    %295 = arith.maximumf %294, %288 : vector<2x1xf32>
    %296 = arith.subf %281, %295 : vector<2x1xf32>
    %297 = math.exp %296 : vector<2x1xf32>
    %298 = arith.subf %282, %295 : vector<2x1xf32>
    %299 = math.exp %298 : vector<2x1xf32>
    %300 = arith.subf %283, %295 : vector<2x1xf32>
    %301 = math.exp %300 : vector<2x1xf32>
    %302 = arith.subf %284, %295 : vector<2x1xf32>
    %303 = math.exp %302 : vector<2x1xf32>
    %304 = arith.subf %285, %295 : vector<2x1xf32>
    %305 = math.exp %304 : vector<2x1xf32>
    %306 = arith.subf %286, %295 : vector<2x1xf32>
    %307 = math.exp %306 : vector<2x1xf32>
    %308 = arith.subf %287, %295 : vector<2x1xf32>
    %309 = math.exp %308 : vector<2x1xf32>
    %310 = arith.subf %288, %295 : vector<2x1xf32>
    %311 = math.exp %310 : vector<2x1xf32>
    %312 = arith.addf %297, %299 : vector<2x1xf32>
    %313 = arith.addf %312, %301 : vector<2x1xf32>
    %314 = arith.addf %313, %303 : vector<2x1xf32>
    %315 = arith.addf %314, %305 : vector<2x1xf32>
    %316 = arith.addf %315, %307 : vector<2x1xf32>
    %317 = arith.addf %316, %309 : vector<2x1xf32>
    %318 = arith.addf %317, %311 : vector<2x1xf32>
    %319 = tpu.reciprocal %318 {approx = true} : vector<2x1xf32> -> vector<2x1xf32>
    %cst_63 = arith.constant 0.000000e+00 : f32
    %320 = vector.broadcast %cst_63 : f32 to vector<2x32xf32>
    %321 = arith.mulf %297, %319 : vector<2x1xf32>
    %322 = vector.broadcast %321 : vector<2x1xf32> to vector<2x32xf32>
    %323 = arith.mulf %322, %46 : vector<2x32xf32>
    %324 = arith.addf %320, %323 : vector<2x32xf32>
    %325 = arith.mulf %299, %319 : vector<2x1xf32>
    %326 = vector.broadcast %325 : vector<2x1xf32> to vector<2x32xf32>
    %327 = arith.mulf %326, %77 : vector<2x32xf32>
    %328 = arith.addf %324, %327 : vector<2x32xf32>
    %329 = arith.mulf %301, %319 : vector<2x1xf32>
    %330 = vector.broadcast %329 : vector<2x1xf32> to vector<2x32xf32>
    %331 = arith.mulf %330, %108 : vector<2x32xf32>
    %332 = arith.addf %328, %331 : vector<2x32xf32>
    %333 = arith.mulf %303, %319 : vector<2x1xf32>
    %334 = vector.broadcast %333 : vector<2x1xf32> to vector<2x32xf32>
    %335 = arith.mulf %334, %139 : vector<2x32xf32>
    %336 = arith.addf %332, %335 : vector<2x32xf32>
    %337 = arith.mulf %305, %319 : vector<2x1xf32>
    %338 = vector.broadcast %337 : vector<2x1xf32> to vector<2x32xf32>
    %339 = arith.mulf %338, %170 : vector<2x32xf32>
    %340 = arith.addf %336, %339 : vector<2x32xf32>
    %341 = arith.mulf %307, %319 : vector<2x1xf32>
    %342 = vector.broadcast %341 : vector<2x1xf32> to vector<2x32xf32>
    %343 = arith.mulf %342, %201 : vector<2x32xf32>
    %344 = arith.addf %340, %343 : vector<2x32xf32>
    %345 = arith.mulf %309, %319 : vector<2x1xf32>
    %346 = vector.broadcast %345 : vector<2x1xf32> to vector<2x32xf32>
    %347 = arith.mulf %346, %232 : vector<2x32xf32>
    %348 = arith.addf %344, %347 : vector<2x32xf32>
    %349 = arith.mulf %311, %319 : vector<2x1xf32>
    %350 = vector.broadcast %349 : vector<2x1xf32> to vector<2x32xf32>
    %351 = arith.mulf %350, %263 : vector<2x32xf32>
    %352 = arith.addf %348, %351 : vector<2x32xf32>
    %353 = arith.mulf %352, %352 : vector<2x32xf32>
    %cst_64 = arith.constant dense<0.000000e+00> : vector<2xf32>
    %354 = vector.multi_reduction <add>, %353, %cst_64 [1] : vector<2x32xf32> to vector<2xf32>
    %355 = vector.shape_cast %354 : vector<2xf32> to vector<2x1xf32>
    %cst_65 = arith.constant 1.000000e-24 : f32
    %356 = vector.broadcast %cst_65 : f32 to vector<2x1xf32>
    %357 = arith.maximumf %355, %356 : vector<2x1xf32>
    %358 = math.rsqrt %357 : vector<2x1xf32>
    %359 = vector.broadcast %358 : vector<2x1xf32> to vector<2x32xf32>
    %360 = arith.mulf %352, %359 : vector<2x32xf32>
    %c0_66 = arith.constant 0 : index
    %c0_67 = arith.constant 0 : index
    %361 = vector.load %arg9[%c0_66, %c0_67] : memref<2x32xf32, #tpu.memory_space<vmem>>, vector<2x32xf32>
    tpu.vector_store %arg9[%c0_66, %c0_67], %360 {strides = array<i32>} : memref<2x32xf32, #tpu.memory_space<vmem>>, vector<2x32xf32>,
    return
  }
}

</mosaic_0001>

<llo_original>
// kernel: tpu_custom_call.1
$region0: #{tpu_custom_call.1}
  #allocation0 [shape = 'u32[]', space=smem, size = 0x4, offset = 0x4, fixed_abs, tag = 'smem constant byte address 0x4 - core index']
  #allocation1 [shape = 'u32[144,128]{1,0:T(1,128)}', space=vmem, size = 0x12000, scoped, tag = 'internal scratch']
  #allocation2 [shape = 'f32[16,32]{1,0:T(8,128)}', space=vmem, size = 0x2000, scoped, tag = 'scratch operand']
  #allocation3 [shape = 'f32[1,1]{1,0:T(1,128)S(1)}', space=vmem, size = 0x200, scoped, tag = 'scoped memory for tpu_custom_call.1']
  %s0 = inlined_call_operand.hbm [shape: bf16[16,32], index: 0, kind: input, shape index: {}]
  %s1 = inlined_call_operand.hbm [shape: bf16[32,96], index: 1, kind: input, shape index: {}]
  %s2 = inlined_call_operand.hbm [shape: bf16[32,96], index: 2, kind: input, shape index: {}]
  %s3 = inlined_call_operand.vmem [shape: f32[1,96], index: 3, kind: input, shape index: {}]
  %s4 = inlined_call_operand.vmem [shape: f32[1,32], index: 4, kind: input, shape index: {}]
  %s5 = inlined_call_operand.vmem [shape: bf16[32,64], index: 5, kind: input, shape index: {}]
  %s6 = inlined_call_operand.vmem [shape: f32[1,64], index: 6, kind: input, shape index: {}]
  %s7 = inlined_call_operand.vmem [shape: f32[1,64], index: 7, kind: input, shape index: {}]
  %s8 = inlined_call_operand.<no memory space> [shape: f32[1,1], index: 8, kind: input, shape index: {}]
  %s9 = inlined_call_operand.hbm [shape: f32[2,32], index: 9, kind: output, shape index: {}]
  %s10 = sld [smem:[#allocation0]]
  $region58: #{tpu_custom_call.1} parent=0
    _
  %s12 = ssub.s32 1, %s10
  %s13 = scalar_select 0, %s12, %s10
  %v14 = vstv %s8
  %15 = vst [vmem:[#allocation3] sm:$0x1] %v14
  $region1: #{tpu_custom_call.1} parent=0
    #allocation4 [shape = 'u8[4096]{0}', space=vmem, size = 0x1000, scoped, tag = 'input window, operand 0, single buffered']
    #allocation5 [shape = 's32[1]{0}', space=sflag, size = 0x4, scoped, tag = 'scoped memory for tpu_custom_call.1']
    #allocation6 [shape = 's32[1]{0}', space=sflag, size = 0x4, scoped, tag = 'scoped memory for tpu_custom_call.1']
    #allocation7 [shape = 'u8[8192]{0}', space=vmem, size = 0x2000, scoped, tag = 'input window, operand 1, single buffered']
    #allocation8 [shape = 's32[1]{0}', space=sflag, size = 0x4, scoped, tag = 'scoped memory for tpu_custom_call.1']
    #allocation9 [shape = 'u8[8192]{0}', space=vmem, size = 0x2000, scoped, tag = 'input window, operand 2, single buffered']
    #allocation10 [shape = 'u8[1024]{0}', space=vmem, size = 0x400, scoped, tag = 'output window, operand 0, single buffered']
    %16 = vsyncpa [#allocation5], 0
    %17 = vsyncpa [#allocation8], 0
    %18 = vsyncpa [#allocation6], 0
    // Predicated region
    $region2: #{tpu_custom_call.1} parent=1 // pred_check
      _
    $region3: #{tpu_custom_call.1} parent=1 // pred_check_branch
      %20 = sbr.rel (0) target = $region5
    $region4: #{tpu_custom_call.1} parent=1 // pred_region
      %s22 = ssub.s32 128, 128
      %23 = vsyncadd [#allocation5], %s22
      %s24 = sshll.u32 [#allocation4], 4
      %s25 = int_to_ptr.vmem [resolvable:$true] %s24
      %30 = dma.hbm_to_vmem [thread:$0]  %s0, 128, %s25, [#allocation5], 64, 64, 4
    $region5: #{tpu_custom_call.1} parent=1 // pred_fallthru
      _
    // Predicated region
    $region6: #{tpu_custom_call.1} parent=1 // pred_check
      _
    $region7: #{tpu_custom_call.1} parent=1 // pred_check_branch
      %32 = sbr.rel (0) target = $region9
    $region8: #{tpu_custom_call.1} parent=1 // pred_region
      %s34 = ssub.s32 256, 256
      %35 = vsyncadd [#allocation8], %s34
      %s36 = sshll.u32 [#allocation7], 4
      %s37 = int_to_ptr.vmem [resolvable:$true] %s36
      %42 = dma.hbm_to_vmem [thread:$0]  %s1, 256, %s37, [#allocation8], 64, 64, 4
    $region9: #{tpu_custom_call.1} parent=1 // pred_fallthru
      _
    // Predicated region
    $region10: #{tpu_custom_call.1} parent=1 // pred_check
      _
    $region11: #{tpu_custom_call.1} parent=1 // pred_check_branch
      %44 = sbr.rel (0) target = $region13
    $region12: #{tpu_custom_call.1} parent=1 // pred_region
      %s46 = ssub.s32 256, 256
      %47 = vsyncadd [#allocation8], %s46
      %s48 = sshll.u32 [#allocation9], 4
      %s49 = int_to_ptr.vmem [resolvable:$true] %s48
      %54 = dma.hbm_to_vmem [thread:$0]  %s2, 256, %s49, [#allocation8], 64, 64, 4
    $region13: #{tpu_custom_call.1} parent=1 // pred_fallthru
      _
    // Predicated region
    $region14: #{tpu_custom_call.1} parent=1 // pred_check
      _
    $region15: #{tpu_custom_call.1} parent=1 // pred_check_branch
      %56 = sbr.rel (0) target = $region17
    $region16: #{tpu_custom_call.1} parent=1 // pred_region
      _
    $region17: #{tpu_custom_call.1} parent=1 // pred_fallthru
      _
    // Predicated region
    $region18: #{tpu_custom_call.1} parent=1 // pred_check
      _
    $region19: #{tpu_custom_call.1} parent=1 // pred_check_branch
      %58 = sbr.rel (0) target = $region21
    $region20: #{tpu_custom_call.1} parent=1 // pred_region
      _
    $region21: #{tpu_custom_call.1} parent=1 // pred_fallthru
      _
    // Predicated region
    $region22: #{tpu_custom_call.1} parent=1 // pred_check
      _
    $region23: #{tpu_custom_call.1} parent=1 // pred_check_branch
      %60 = sbr.rel (0) target = $region25
    $region24: #{tpu_custom_call.1} parent=1 // pred_region
      _
    $region25: #{tpu_custom_call.1} parent=1 // pred_fallthru
      _
    // Predicated region
    $region26: #{tpu_custom_call.1} parent=1 // pred_check
      _
    $region27: #{tpu_custom_call.1} parent=1 // pred_check_branch
      %62 = sbr.rel (0) target = $region29
    $region28: #{tpu_custom_call.1} parent=1 // pred_region
      _
    $region29: #{tpu_custom_call.1} parent=1 // pred_fallthru
      _
    // Predicated region
    $region30: #{tpu_custom_call.1} parent=1 // pred_check
      _
    $region31: #{tpu_custom_call.1} parent=1 // pred_check_branch
      %64 = sbr.rel (0) target = $region33
    $region32: #{tpu_custom_call.1} parent=1 // pred_region
      _
    $region33: #{tpu_custom_call.1} parent=1 // pred_fallthru
      _
    // Predicated region
    $region34: #{tpu_custom_call.1} parent=1 // pred_check
      _
    $region35: #{tpu_custom_call.1} parent=1 // pred_check_branch
      %66 = sbr.rel (0) target = $region37
    $region36: #{tpu_custom_call.1} parent=1 // pred_region
      _
    $region37: #{tpu_custom_call.1} parent=1 // pred_fallthru
      _
    // Predicated region
    $region38: #{tpu_custom_call.1} parent=1 // pred_check
      _
    $region39: #{tpu_custom_call.1} parent=1 // pred_check_branch
      %68 = sbr.rel (0) target = $region41
    $region40: #{tpu_custom_call.1} parent=1 // pred_region
      %69 = dma.done [#allocation5], 128
    $region41: #{tpu_custom_call.1} parent=1 // pred_fallthru
      _
    // Predicated region
    $region42: #{tpu_custom_call.1} parent=1 // pred_check
      _
    $region43: #{tpu_custom_call.1} parent=1 // pred_check_branch
      %71 = sbr.rel (0) target = $region45
    $region44: #{tpu_custom_call.1} parent=1 // pred_region
      %72 = dma.done [#allocation8], 256
    $region45: #{tpu_custom_call.1} parent=1 // pred_fallthru
      _
    // Predicated region
    $region46: #{tpu_custom_call.1} parent=1 // pred_check
      _
    $region47: #{tpu_custom_call.1} parent=1 // pred_check_branch
      %74 = sbr.rel (0) target = $region49
    $region48: #{tpu_custom_call.1} parent=1 // pred_region
      %75 = dma.done [#allocation8], 256
    $region49: #{tpu_custom_call.1} parent=1 // pred_fallthru
      _
    %v77 = vld [vmem:[#allocation7] sm:$0xf]
    %v78 = vld [vmem:[#allocation7 + $0x4] sm:$0xf]
    %v79 = vld [vmem:[#allocation7 + $0x8] sm:$0xf]
    %v80 = vld [vmem:[#allocation7 + $0xc] sm:$0xf]
    %v81 = vld [vmem:[#allocation9] sm:$0xf]
    %v82 = vld [vmem:[#allocation9 + $0x4] sm:$0xf]
    %v83 = vld [vmem:[#allocation9 + $0x8] sm:$0xf]
    %v84 = vld [vmem:[#allocation9 + $0xc] sm:$0xf]
    %v85 = vld [vmem:[%s3] sm:$0x1]
    %v86 = vld [vmem:[%s4] sm:$0x1]
    %v87 = vld [vmem:[#allocation4] sm:$0xf]
    %v88 = vld [vmem:[#allocation4 + $0x4] sm:$0xf]
    %v90 = vlaneseq
    %v91 = vshrl.u32 %v90, 7
    %v92 = vsub.s32 0, %v91
    %v93 = vrot.slane %v85, %v92
    %v97 = vunpack.c.l.b16 %v87
    %v98 = vunpack.c.l.b16 %v88
    %v99 = vpack.c.b16 %v98, %v97
    %v104 = vunpack.c.l.b16 %v77
    %v105 = vunpack.c.l.b16 %v78
    %v106 = vunpack.c.l.b16 %v79
    %v107 = vunpack.c.l.b16 %v80
    %v108 = vpack.c.b16 %v105, %v104
    %v109 = vpack.c.b16 %v107, %v106
    %vm112 = vcmask 261120
    %v114 = vsel %vm112, %v99, 0
    %116 = vmatprep.subr.bf16.mxu0 0
    %117 = vmatpush1.bf16.msra.mxu0 %v108
    %118 = vmatprep.subr.bf16.mxu0 0
    %119 = vmatpush1.bf16.msra.mxu0 %v109
    %120 = vmatprep.subr.bf16.mxu0 0
    %121 = vmatpush1.bf16.msra.mxu0 0
    %122 = vmatprep.subr.bf16.mxu0 0
    %123 = vmatpush1.bf16.msra.mxu0 0
    %124 = vmatprep.subr.bf16.mxu0 0
    %125 = vmatpush1.bf16.msra.mxu0 0
    %126 = vmatprep.subr.bf16.mxu0 0
    %127 = vmatpush1.bf16.msra.mxu0 0
    %128 = vmatprep.subr.bf16.mxu0 0
    %129 = vmatpush1.bf16.msra.mxu0 0
    %130 = vmatprep.subr.bf16.mxu0 0
    %131 = vmatpush1.bf16.msra.mxu0 0
    %132 = vmatprep.subr.bf16.mxu0 0
    %133 = vmatpush1.bf16.msra.mxu0 0
    %134 = vmatprep.subr.bf16.mxu0 0
    %135 = vmatpush1.bf16.msra.mxu0 0
    %136 = vmatprep.subr.bf16.mxu0 0
    %137 = vmatpush1.bf16.msra.mxu0 0
    %138 = vmatprep.subr.bf16.mxu0 0
    %139 = vmatpush1.bf16.msra.mxu0 0
    %140 = vmatprep.subr.bf16.mxu0 0
    %141 = vmatpush1.bf16.msra.mxu0 0
    %142 = vmatprep.subr.bf16.mxu0 0
    %143 = vmatpush1.bf16.msra.mxu0 0
    %144 = vmatprep.subr.bf16.mxu0 0
    %145 = vmatpush1.bf16.msra.mxu0 0
    %146 = vmatprep.subr.bf16.mxu0 0
    %147 = vmatpush1.bf16.msra.mxu0 0
    %148 = vmatprep.mubr.bf16.mxu0 0
    %149 = vmatmul.mubr.bf16.gmra.mrb[0].mxu0 %v114
    %v150 = vpop.f32.mrb[0].mxu0
    %v151 = vadd.f32 %v93, %v150
    %v152 = vpop.f32.mrb[0].mxu0
    %v153 = vpop.f32.mrb[0].mxu0
    %v154 = vadd.f32 %v93, %v153
    %v155 = vpop.f32.mrb[0].mxu0
    %156 = vdwg.mxu0
    %v161 = vunpack.c.l.b16 %v81
    %v162 = vunpack.c.l.b16 %v82
    %v163 = vunpack.c.l.b16 %v83
    %v164 = vunpack.c.l.b16 %v84
    %v165 = vpack.c.b16 %v162, %v161
    %v166 = vpack.c.b16 %v164, %v163
    %v170 = vsel %vm112, 0, 0
    %172 = vmatprep.subr.bf16.mxu0 0
    %173 = vmatpush1.bf16.msra.mxu0 %v165
    %174 = vmatprep.subr.bf16.mxu0 0
    %175 = vmatpush1.bf16.msra.mxu0 %v166
    %176 = vmatprep.subr.bf16.mxu0 0
    %177 = vmatpush1.bf16.msra.mxu0 0
    %178 = vmatprep.subr.bf16.mxu0 0
    %179 = vmatpush1.bf16.msra.mxu0 0
    %180 = vmatprep.subr.bf16.mxu0 0
    %181 = vmatpush1.bf16.msra.mxu0 0
    %182 = vmatprep.subr.bf16.mxu0 0
    %183 = vmatpush1.bf16.msra.mxu0 0
    %184 = vmatprep.subr.bf16.mxu0 0
    %185 = vmatpush1.bf16.msra.mxu0 0
    %186 = vmatprep.subr.bf16.mxu0 0
    %187 = vmatpush1.bf16.msra.mxu0 0
    %188 = vmatprep.subr.bf16.mxu0 0
    %189 = vmatpush1.bf16.msra.mxu0 0
    %190 = vmatprep.subr.bf16.mxu0 0
    %191 = vmatpush1.bf16.msra.mxu0 0
    %192 = vmatprep.subr.bf16.mxu0 0
    %193 = vmatpush1.bf16.msra.mxu0 0
    %194 = vmatprep.subr.bf16.mxu0 0
    %195 = vmatpush1.bf16.msra.mxu0 0
    %196 = vmatprep.subr.bf16.mxu0 0
    %197 = vmatpush1.bf16.msra.mxu0 0
    %198 = vmatprep.subr.bf16.mxu0 0
    %199 = vmatpush1.bf16.msra.mxu0 0
    %200 = vmatprep.subr.bf16.mxu0 0
    %201 = vmatpush1.bf16.msra.mxu0 0
    %202 = vmatprep.subr.bf16.mxu0 0
    %203 = vmatpush1.bf16.msra.mxu0 0
    %204 = vmatprep.mubr.bf16.mxu0 0
    %205 = vmatmul.mubr.bf16.gmra.mrb[0].mxu0 %v170
    %v206 = vpop.f32.mrb[0].mxu0
    %v207 = vadd.f32 0.0, %v206
    %v208 = vpop.f32.mrb[0].mxu0
    %v209 = vpop.f32.mrb[0].mxu0
    %v210 = vpop.f32.mrb[0].mxu0
    %211 = vdwg.mxu0
    %v212 = vadd.f32 %v151, %v207
    %v213 = vxor.u32 %v212, 2147483648
    %v214 = vmul.f32 %v213, 1.442695
    %v215 = vpow.pop %v214
    %v216 = vadd.f32 %v215, 1.0
    %v217 = vrcp.pop %v216
    %v218 = vmul.f32 1.0, %v217
    %v220 = vlaneseq
    %v221 = vshrl.u32 %v220, 7
    %v222 = vsub.s32 0, %v221
    %v223 = vrot.slane %v86, %v222
    %224 = vrot.lane.b32.xlu0 %v223, 64
    %v225 = vpop.permute.xlu0 %224
    %v227 = vadd.f32 %v207, %v225
    %229 = vrot.lane.b32.xlu0 %v227, 64
    %v230 = vpop.permute.xlu0 %229
    %v232 = vmul.f32 %v218, %v230
    %234 = vrot.lane.b32.xlu0 %v232, 64
    %v235 = vpop.permute.xlu0 %234
    %v237 = vadd.f32 %v151, %v235
    %v238 = vtanh.pop %v237
    %v239 = vsub.f32 1.0, %v218
    %241 = vrot.lane.b32.xlu0 %v238, 96
    %v242 = vpop.permute.xlu0 %241
    %v244 = vmul.f32 %v239, %v242
    %v245 = vmul.f32 %v218, 0.0
    %v246 = vadd.f32 %v244, %v245
    %248 = vrot.lane.b32.xlu0 %v246, 96
    %v249 = vpop.permute.xlu0 %248
    %vm251 = vcmask 254976
    %252 = vst.msk [vmem:[#allocation2] sm:$0x3] %vm251, %v249
    %v253 = vpack.c.bf16 %v246, %v246
    %255 = vrot.lane.b32.xlu0 %v253, 96
    %v256 = vpop.permute.xlu0 %255
    %v258 = vsel %vm112, %v256, 0
    %260 = vmatprep.subr.bf16.mxu0 0
    %261 = vmatpush1.bf16.msra.mxu0 %v165
    %262 = vmatprep.subr.bf16.mxu0 0
    %263 = vmatpush1.bf16.msra.mxu0 %v166
    %264 = vmatprep.subr.bf16.mxu0 0
    %265 = vmatpush1.bf16.msra.mxu0 0
    %266 = vmatprep.subr.bf16.mxu0 0
    %267 = vmatpush1.bf16.msra.mxu0 0
    %268 = vmatprep.subr.bf16.mxu0 0
    %269 = vmatpush1.bf16.msra.mxu0 0
    %270 = vmatprep.subr.bf16.mxu0 0
    %271 = vmatpush1.bf16.msra.mxu0 0
    %272 = vmatprep.subr.bf16.mxu0 0
    %273 = vmatpush1.bf16.msra.mxu0 0
    %274 = vmatprep.subr.bf16.mxu0 0
    %275 = vmatpush1.bf16.msra.mxu0 0
    %276 = vmatprep.subr.bf16.mxu0 0
    %277 = vmatpush1.bf16.msra.mxu0 0
    %278 = vmatprep.subr.bf16.mxu0 0
    %279 = vmatpush1.bf16.msra.mxu0 0
    %280 = vmatprep.subr.bf16.mxu0 0
    %281 = vmatpush1.bf16.msra.mxu0 0
    %282 = vmatprep.subr.bf16.mxu0 0
    %283 = vmatpush1.bf16.msra.mxu0 0
    %284 = vmatprep.subr.bf16.mxu0 0
    %285 = vmatpush1.bf16.msra.mxu0 0
    %286 = vmatprep.subr.bf16.mxu0 0
    %287 = vmatpush1.bf16.msra.mxu0 0
    %288 = vmatprep.subr.bf16.mxu0 0
    %289 = vmatpush1.bf16.msra.mxu0 0
    %290 = vmatprep.subr.bf16.mxu0 0
    %291 = vmatpush1.bf16.msra.mxu0 0
    %292 = vmatprep.mubr.bf16.mxu0 0
    %293 = vmatmul.mubr.bf16.gmra.mrb[0].mxu0 %v258
    %v294 = vpop.f32.mrb[0].mxu0
    %v295 = vadd.f32 0.0, %v294
    %v296 = vpop.f32.mrb[0].mxu0
    %v297 = vpop.f32.mrb[0].mxu0
    %v298 = vpop.f32.mrb[0].mxu0
    %299 = vdwg.mxu0
    %v301 = vrot.slane %v295, 6
    %v303 = vadd.f32 %v151, %v301
    %v304 = vxor.u32 %v303, 2147483648
    %v305 = vmul.f32 %v304, 1.442695
    %v306 = vpow.pop %v305
    %v307 = vadd.f32 %v306, 1.0
    %v308 = vrcp.pop %v307
    %v309 = vmul.f32 1.0, %v308
    %v310 = vadd.f32 %v295, %v225
    %v312 = vrot.slane %v310, 6
    %313 = vrot.lane.b32.xlu0 %v312, 64
    %v314 = vpop.permute.xlu0 %313
    %v316 = vmul.f32 %v309, %v314
    %318 = vrot.lane.b32.xlu0 %v316, 64
    %v319 = vpop.permute.xlu0 %318
    %v321 = vadd.f32 %v151, %v319
    %v322 = vtanh.pop %v321
    %v323 = vsub.f32 1.0, %v309
    %325 = vrot.lane.b32.xlu0 %v322, 96
    %v326 = vpop.permute.xlu0 %325
    %v328 = vmul.f32 %v323, %v326
    %v329 = vrot.slane %v246, 6
    %v331 = vmul.f32 %v309, %v329
    %v332 = vadd.f32 %v328, %v331
    %334 = vrot.lane.b32.xlu0 %v332, 96
    %v335 = vpop.permute.xlu0 %334
    %vm337 = vcmask 257026
    %338 = vst.msk [vmem:[#allocation2] sm:$0xc] %vm337, %v335
    %v339 = vpack.c.bf16 %v332, %v332
    %v341 = vrot.slane %v339, 1
    %342 = vrot.lane.b32.xlu0 %v341, 96
    %v343 = vpop.permute.xlu0 %342
    %v345 = vsel %vm112, %v343, 0
    %347 = vmatprep.subr.bf16.mxu0 0
    %348 = vmatpush1.bf16.msra.mxu0 %v165
    %349 = vmatprep.subr.bf16.mxu0 0
    %350 = vmatpush1.bf16.msra.mxu0 %v166
    %351 = vmatprep.subr.bf16.mxu0 0
    %352 = vmatpush1.bf16.msra.mxu0 0
    %353 = vmatprep.subr.bf16.mxu0 0
    %354 = vmatpush1.bf16.msra.mxu0 0
    %355 = vmatprep.subr.bf16.mxu0 0
    %356 = vmatpush1.bf16.msra.mxu0 0
    %357 = vmatprep.subr.bf16.mxu0 0
    %358 = vmatpush1.bf16.msra.mxu0 0
    %359 = vmatprep.subr.bf16.mxu0 0
    %360 = vmatpush1.bf16.msra.mxu0 0
    %361 = vmatprep.subr.bf16.mxu0 0
    %362 = vmatpush1.bf16.msra.mxu0 0
    %363 = vmatprep.subr.bf16.mxu0 0
    %364 = vmatpush1.bf16.msra.mxu0 0
    %365 = vmatprep.subr.bf16.mxu0 0
    %366 = vmatpush1.bf16.msra.mxu0 0
    %367 = vmatprep.subr.bf16.mxu0 0
    %368 = vmatpush1.bf16.msra.mxu0 0
    %369 = vmatprep.subr.bf16.mxu0 0
    %370 = vmatpush1.bf16.msra.mxu0 0
    %371 = vmatprep.subr.bf16.mxu0 0
    %372 = vmatpush1.bf16.msra.mxu0 0
    %373 = vmatprep.subr.bf16.mxu0 0
    %374 = vmatpush1.bf16.msra.mxu0 0
    %375 = vmatprep.subr.bf16.mxu0 0
    %376 = vmatpush1.bf16.msra.mxu0 0
    %377 = vmatprep.subr.bf16.mxu0 0
    %378 = vmatpush1.bf16.msra.mxu0 0
    %379 = vmatprep.mubr.bf16.mxu0 0
    %380 = vmatmul.mubr.bf16.gmra.mrb[0].mxu0 %v345
    %v381 = vpop.f32.mrb[0].mxu0
    %v382 = vadd.f32 0.0, %v381
    %v383 = vpop.f32.mrb[0].mxu0
    %v384 = vpop.f32.mrb[0].mxu0
    %v385 = vpop.f32.mrb[0].mxu0
    %386 = vdwg.mxu0
    %v388 = vrot.slane %v382, 4
    %v390 = vadd.f32 %v151, %v388
    %v391 = vxor.u32 %v390, 2147483648
    %v392 = vmul.f32 %v391, 1.442695
    %v393 = vpow.pop %v392
    %v394 = vadd.f32 %v393, 1.0
    %v395 = vrcp.pop %v394
    %v396 = vmul.f32 1.0, %v395
    %v397 = vadd.f32 %v382, %v225
    %v399 = vrot.slane %v397, 4
    %400 = vrot.lane.b32.xlu0 %v399, 64
    %v401 = vpop.permute.xlu0 %400
    %v403 = vmul.f32 %v396, %v401
    %405 = vrot.lane.b32.xlu0 %v403, 64
    %v406 = vpop.permute.xlu0 %405
    %v408 = vadd.f32 %v151, %v406
    %v409 = vtanh.pop %v408
    %v410 = vsub.f32 1.0, %v396
    %412 = vrot.lane.b32.xlu0 %v409, 96
    %v413 = vpop.permute.xlu0 %412
    %v415 = vmul.f32 %v410, %v413
    %v416 = vrot.slane %v332, 6
    %v418 = vmul.f32 %v396, %v416
    %v419 = vadd.f32 %v415, %v418
    %421 = vrot.lane.b32.xlu0 %v419, 96
    %v422 = vpop.permute.xlu0 %421
    %vm424 = vcmask 259076
    %425 = vst.msk [vmem:[#allocation2] sm:$0x30] %vm424, %v422
    %v426 = vpack.c.bf16 %v419, %v419
    %v428 = vrot.slane %v426, 2
    %429 = vrot.lane.b32.xlu0 %v428, 96
    %v430 = vpop.permute.xlu0 %429
    %v432 = vsel %vm112, %v430, 0
    %434 = vmatprep.subr.bf16.mxu0 0
    %435 = vmatpush1.bf16.msra.mxu0 %v165
    %436 = vmatprep.subr.bf16.mxu0 0
    %437 = vmatpush1.bf16.msra.mxu0 %v166
    %438 = vmatprep.subr.bf16.mxu0 0
    %439 = vmatpush1.bf16.msra.mxu0 0
    %440 = vmatprep.subr.bf16.mxu0 0
    %441 = vmatpush1.bf16.msra.mxu0 0
    %442 = vmatprep.subr.bf16.mxu0 0
    %443 = vmatpush1.bf16.msra.mxu0 0
    %444 = vmatprep.subr.bf16.mxu0 0
    %445 = vmatpush1.bf16.msra.mxu0 0
    %446 = vmatprep.subr.bf16.mxu0 0
    %447 = vmatpush1.bf16.msra.mxu0 0
    %448 = vmatprep.subr.bf16.mxu0 0
    %449 = vmatpush1.bf16.msra.mxu0 0
    %450 = vmatprep.subr.bf16.mxu0 0
    %451 = vmatpush1.bf16.msra.mxu0 0
    %452 = vmatprep.subr.bf16.mxu0 0
    %453 = vmatpush1.bf16.msra.mxu0 0
    %454 = vmatprep.subr.bf16.mxu0 0
    %455 = vmatpush1.bf16.msra.mxu0 0
    %456 = vmatprep.subr.bf16.mxu0 0
    %457 = vmatpush1.bf16.msra.mxu0 0
    %458 = vmatprep.subr.bf16.mxu0 0
    %459 = vmatpush1.bf16.msra.mxu0 0
    %460 = vmatprep.subr.bf16.mxu0 0
    %461 = vmatpush1.bf16.msra.mxu0 0
    %462 = vmatprep.subr.bf16.mxu0 0
    %463 = vmatpush1.bf16.msra.mxu0 0
    %464 = vmatprep.subr.bf16.mxu0 0
    %465 = vmatpush1.bf16.msra.mxu0 0
    %466 = vmatprep.mubr.bf16.mxu0 0
    %467 = vmatmul.mubr.bf16.gmra.mrb[0].mxu0 %v432
    %v468 = vpop.f32.mrb[0].mxu0
    %v469 = vadd.f32 0.0, %v468
    %v470 = vpop.f32.mrb[0].mxu0
    %v471 = vpop.f32.mrb[0].mxu0
    %v472 = vpop.f32.mrb[0].mxu0
    %473 = vdwg.mxu0
    %v475 = vrot.slane %v469, 2
    %v477 = vadd.f32 %v151, %v475
    %v478 = vxor.u32 %v477, 2147483648
    %v479 = vmul.f32 %v478, 1.442695
    %v480 = vpow.pop %v479
    %v481 = vadd.f32 %v480, 1.0
    %v482 = vrcp.pop %v481
    %v483 = vmul.f32 1.0, %v482
    %v484 = vadd.f32 %v469, %v225
    %v486 = vrot.slane %v484, 2
    %487 = vrot.lane.b32.xlu0 %v486, 64
    %v488 = vpop.permute.xlu0 %487
    %v490 = vmul.f32 %v483, %v488
    %492 = vrot.lane.b32.xlu0 %v490, 64
    %v493 = vpop.permute.xlu0 %492
    %v495 = vadd.f32 %v151, %v493
    %v496 = vtanh.pop %v495
    %v497 = vsub.f32 1.0, %v483
    %499 = vrot.lane.b32.xlu0 %v496, 96
    %v500 = vpop.permute.xlu0 %499
    %v502 = vmul.f32 %v497, %v500
    %v503 = vrot.slane %v419, 6
    %v505 = vmul.f32 %v483, %v503
    %v506 = vadd.f32 %v502, %v505
    %508 = vrot.lane.b32.xlu0 %v506, 96
    %v509 = vpop.permute.xlu0 %508
    %vm511 = vcmask 261126
    %512 = vst.msk [vmem:[#allocation2] sm:$0xc0] %vm511, %v509
    %v513 = vpack.c.bf16 %v506, %v506
    %v515 = vrot.slane %v513, 3
    %516 = vrot.lane.b32.xlu0 %v515, 96
    %v517 = vpop.permute.xlu0 %516
    %v519 = vsel %vm112, %v517, 0
    %521 = vmatprep.subr.bf16.mxu0 0
    %522 = vmatpush1.bf16.msra.mxu0 %v165
    %523 = vmatprep.subr.bf16.mxu0 0
    %524 = vmatpush1.bf16.msra.mxu0 %v166
    %525 = vmatprep.subr.bf16.mxu0 0
    %526 = vmatpush1.bf16.msra.mxu0 0
    %527 = vmatprep.subr.bf16.mxu0 0
    %528 = vmatpush1.bf16.msra.mxu0 0
    %529 = vmatprep.subr.bf16.mxu0 0
    %530 = vmatpush1.bf16.msra.mxu0 0
    %531 = vmatprep.subr.bf16.mxu0 0
    %532 = vmatpush1.bf16.msra.mxu0 0
    %533 = vmatprep.subr.bf16.mxu0 0
    %534 = vmatpush1.bf16.msra.mxu0 0
    %535 = vmatprep.subr.bf16.mxu0 0
    %536 = vmatpush1.bf16.msra.mxu0 0
    %537 = vmatprep.subr.bf16.mxu0 0
    %538 = vmatpush1.bf16.msra.mxu0 0
    %539 = vmatprep.subr.bf16.mxu0 0
    %540 = vmatpush1.bf16.msra.mxu0 0
    %541 = vmatprep.subr.bf16.mxu0 0
    %542 = vmatpush1.bf16.msra.mxu0 0
    %543 = vmatprep.subr.bf16.mxu0 0
    %544 = vmatpush1.bf16.msra.mxu0 0
    %545 = vmatprep.subr.bf16.mxu0 0
    %546 = vmatpush1.bf16.msra.mxu0 0
    %547 = vmatprep.subr.bf16.mxu0 0
    %548 = vmatpush1.bf16.msra.mxu0 0
    %549 = vmatprep.subr.bf16.mxu0 0
    %550 = vmatpush1.bf16.msra.mxu0 0
    %551 = vmatprep.subr.bf16.mxu0 0
    %552 = vmatpush1.bf16.msra.mxu0 0
    %553 = vmatprep.mubr.bf16.mxu0 0
    %554 = vmatmul.mubr.bf16.gmra.mrb[0].mxu0 %v519
    %v555 = vpop.f32.mrb[0].mxu0
    %v556 = vadd.f32 0.0, %v555
    %v557 = vpop.f32.mrb[0].mxu0
    %v558 = vpop.f32.mrb[0].mxu0
    %v559 = vpop.f32.mrb[0].mxu0
    %560 = vdwg.mxu0
    %v561 = vadd.f32 %v154, %v556
    %v562 = vxor.u32 %v561, 2147483648
    %v563 = vmul.f32 %v562, 1.442695
    %v564 = vpow.pop %v563
    %v565 = vadd.f32 %v564, 1.0
    %v566 = vrcp.pop %v565
    %v567 = vmul.f32 1.0, %v566
    %v568 = vadd.f32 %v556, %v225
    %570 = vrot.lane.b32.xlu0 %v568, 64
    %v571 = vpop.permute.xlu0 %570
    %v573 = vmul.f32 %v567, %v571
    %575 = vrot.lane.b32.xlu0 %v573, 64
    %v576 = vpop.permute.xlu0 %575
    %v578 = vadd.f32 %v154, %v576
    %v579 = vtanh.pop %v578
    %v580 = vsub.f32 1.0, %v567
    %582 = vrot.lane.b32.xlu0 %v579, 96
    %v583 = vpop.permute.xlu0 %582
    %v585 = vmul.f32 %v580, %v583
    %v586 = vrot.slane %v506, 6
    %v588 = vmul.f32 %v567, %v586
    %v589 = vadd.f32 %v585, %v588
    %591 = vrot.lane.b32.xlu0 %v589, 96
    %v592 = vpop.permute.xlu0 %591
    %594 = vst.msk [vmem:[#allocation2 + $0x8] sm:$0x3] %vm251, %v592
    %v595 = vpack.c.bf16 %v589, %v589
    %597 = vrot.lane.b32.xlu0 %v595, 96
    %v598 = vpop.permute.xlu0 %597
    %v600 = vsel %vm112, %v598, 0
    %602 = vmatprep.subr.bf16.mxu0 0
    %603 = vmatpush1.bf16.msra.mxu0 %v165
    %604 = vmatprep.subr.bf16.mxu0 0
    %605 = vmatpush1.bf16.msra.mxu0 %v166
    %606 = vmatprep.subr.bf16.mxu0 0
    %607 = vmatpush1.bf16.msra.mxu0 0
    %608 = vmatprep.subr.bf16.mxu0 0
    %609 = vmatpush1.bf16.msra.mxu0 0
    %610 = vmatprep.subr.bf16.mxu0 0
    %611 = vmatpush1.bf16.msra.mxu0 0
    %612 = vmatprep.subr.bf16.mxu0 0
    %613 = vmatpush1.bf16.msra.mxu0 0
    %614 = vmatprep.subr.bf16.mxu0 0
    %615 = vmatpush1.bf16.msra.mxu0 0
    %616 = vmatprep.subr.bf16.mxu0 0
    %617 = vmatpush1.bf16.msra.mxu0 0
    %618 = vmatprep.subr.bf16.mxu0 0
    %619 = vmatpush1.bf16.msra.mxu0 0
    %620 = vmatprep.subr.bf16.mxu0 0
    %621 = vmatpush1.bf16.msra.mxu0 0
    %622 = vmatprep.subr.bf16.mxu0 0
    %623 = vmatpush1.bf16.msra.mxu0 0
    %624 = vmatprep.subr.bf16.mxu0 0
    %625 = vmatpush1.bf16.msra.mxu0 0
    %626 = vmatprep.subr.bf16.mxu0 0
    %627 = vmatpush1.bf16.msra.mxu0 0
    %628 = vmatprep.subr.bf16.mxu0 0
    %629 = vmatpush1.bf16.msra.mxu0 0
    %630 = vmatprep.subr.bf16.mxu0 0
    %631 = vmatpush1.bf16.msra.mxu0 0
    %632 = vmatprep.subr.bf16.mxu0 0
    %633 = vmatpush1.bf16.msra.mxu0 0
    %634 = vmatprep.mubr.bf16.mxu0 0
    %635 = vmatmul.mubr.bf16.gmra.mrb[0].mxu0 %v600
    %v636 = vpop.f32.mrb[0].mxu0
    %v637 = vadd.f32 0.0, %v636
    %v638 = vpop.f32.mrb[0].mxu0
    %v639 = vpop.f32.mrb[0].mxu0
    %v640 = vpop.f32.mrb[0].mxu0
    %641 = vdwg.mxu0
    %v643 = vrot.slane %v637, 6
    %v645 = vadd.f32 %v154, %v643
    %v646 = vxor.u32 %v645, 2147483648
    %v647 = vmul.f32 %v646, 1.442695
    %v648 = vpow.pop %v647
    %v649 = vadd.f32 %v648, 1.0
    %v650 = vrcp.pop %v649
    %v651 = vmul.f32 1.0, %v650
    %v652 = vadd.f32 %v637, %v225
    %v654 = vrot.slane %v652, 6
    %655 = vrot.lane.b32.xlu0 %v654, 64
    %v656 = vpop.permute.xlu0 %655
    %v658 = vmul.f32 %v651, %v656
    %660 = vrot.lane.b32.xlu0 %v658, 64
    %v661 = vpop.permute.xlu0 %660
    %v663 = vadd.f32 %v154, %v661
    %v664 = vtanh.pop %v663
    %v665 = vsub.f32 1.0, %v651
    %667 = vrot.lane.b32.xlu0 %v664, 96
    %v668 = vpop.permute.xlu0 %667
    %v670 = vmul.f32 %v665, %v668
    %v671 = vrot.slane %v589, 6
    %v673 = vmul.f32 %v651, %v671
    %v674 = vadd.f32 %v670, %v673
    %676 = vrot.lane.b32.xlu0 %v674, 96
    %v677 = vpop.permute.xlu0 %676
    %679 = vst.msk [vmem:[#allocation2 + $0x8] sm:$0xc] %vm337, %v677
    %v680 = vpack.c.bf16 %v674, %v674
    %v682 = vrot.slane %v680, 1
    %683 = vrot.lane.b32.xlu0 %v682, 96
    %v684 = vpop.permute.xlu0 %683
    %v686 = vsel %vm112, %v684, 0
    %688 = vmatprep.subr.bf16.mxu0 0
    %689 = vmatpush1.bf16.msra.mxu0 %v165
    %690 = vmatprep.subr.bf16.mxu0 0
    %691 = vmatpush1.bf16.msra.mxu0 %v166
    %692 = vmatprep.subr.bf16.mxu0 0
    %693 = vmatpush1.bf16.msra.mxu0 0
    %694 = vmatprep.subr.bf16.mxu0 0
    %695 = vmatpush1.bf16.msra.mxu0 0
    %696 = vmatprep.subr.bf16.mxu0 0
    %697 = vmatpush1.bf16.msra.mxu0 0
    %698 = vmatprep.subr.bf16.mxu0 0
    %699 = vmatpush1.bf16.msra.mxu0 0
    %700 = vmatprep.subr.bf16.mxu0 0
    %701 = vmatpush1.bf16.msra.mxu0 0
    %702 = vmatprep.subr.bf16.mxu0 0
    %703 = vmatpush1.bf16.msra.mxu0 0
    %704 = vmatprep.subr.bf16.mxu0 0
    %705 = vmatpush1.bf16.msra.mxu0 0
    %706 = vmatprep.subr.bf16.mxu0 0
    %707 = vmatpush1.bf16.msra.mxu0 0
    %708 = vmatprep.subr.bf16.mxu0 0
    %709 = vmatpush1.bf16.msra.mxu0 0
    %710 = vmatprep.subr.bf16.mxu0 0
    %711 = vmatpush1.bf16.msra.mxu0 0
    %712 = vmatprep.subr.bf16.mxu0 0
    %713 = vmatpush1.bf16.msra.mxu0 0
    %714 = vmatprep.subr.bf16.mxu0 0
    %715 = vmatpush1.bf16.msra.mxu0 0
    %716 = vmatprep.subr.bf16.mxu0 0
    %717 = vmatpush1.bf16.msra.mxu0 0
    %718 = vmatprep.subr.bf16.mxu0 0
    %719 = vmatpush1.bf16.msra.mxu0 0
    %720 = vmatprep.mubr.bf16.mxu0 0
    %721 = vmatmul.mubr.bf16.gmra.mrb[0].mxu0 %v686
    %v722 = vpop.f32.mrb[0].mxu0
    %v723 = vadd.f32 0.0, %v722
    %v724 = vpop.f32.mrb[0].mxu0
    %v725 = vpop.f32.mrb[0].mxu0
    %v726 = vpop.f32.mrb[0].mxu0
    %727 = vdwg.mxu0
    %v729 = vrot.slane %v723, 4
    %v731 = vadd.f32 %v154, %v729
    %v732 = vxor.u32 %v731, 2147483648
    %v733 = vmul.f32 %v732, 1.442695
    %v734 = vpow.pop %v733
    %v735 = vadd.f32 %v734, 1.0
    %v736 = vrcp.pop %v735
    %v737 = vmul.f32 1.0, %v736
    %v738 = vadd.f32 %v723, %v225
    %v740 = vrot.slane %v738, 4
    %741 = vrot.lane.b32.xlu0 %v740, 64
    %v742 = vpop.permute.xlu0 %741
    %v744 = vmul.f32 %v737, %v742
    %746 = vrot.lane.b32.xlu0 %v744, 64
    %v747 = vpop.permute.xlu0 %746
    %v749 = vadd.f32 %v154, %v747
    %v750 = vtanh.pop %v749
    %v751 = vsub.f32 1.0, %v737
    %753 = vrot.lane.b32.xlu0 %v750, 96
    %v754 = vpop.permute.xlu0 %753
    %v756 = vmul.f32 %v751, %v754
    %v757 = vrot.slane %v674, 6
    %v759 = vmul.f32 %v737, %v757
    %v760 = vadd.f32 %v756, %v759
    %762 = vrot.lane.b32.xlu0 %v760, 96
    %v763 = vpop.permute.xlu0 %762
    %765 = vst.msk [vmem:[#allocation2 + $0x8] sm:$0x30] %vm424, %v763
    %v766 = vpack.c.bf16 %v760, %v760
    %v768 = vrot.slane %v766, 2
    %769 = vrot.lane.b32.xlu0 %v768, 96
    %v770 = vpop.permute.xlu0 %769
    %v772 = vsel %vm112, %v770, 0
    %774 = vmatprep.subr.bf16.mxu0 0
    %775 = vmatpush1.bf16.msra.mxu0 %v165
    %776 = vmatprep.subr.bf16.mxu0 0
    %777 = vmatpush1.bf16.msra.mxu0 %v166
    %778 = vmatprep.subr.bf16.mxu0 0
    %779 = vmatpush1.bf16.msra.mxu0 0
    %780 = vmatprep.subr.bf16.mxu0 0
    %781 = vmatpush1.bf16.msra.mxu0 0
    %782 = vmatprep.subr.bf16.mxu0 0
    %783 = vmatpush1.bf16.msra.mxu0 0
    %784 = vmatprep.subr.bf16.mxu0 0
    %785 = vmatpush1.bf16.msra.mxu0 0
    %786 = vmatprep.subr.bf16.mxu0 0
    %787 = vmatpush1.bf16.msra.mxu0 0
    %788 = vmatprep.subr.bf16.mxu0 0
    %789 = vmatpush1.bf16.msra.mxu0 0
    %790 = vmatprep.subr.bf16.mxu0 0
    %791 = vmatpush1.bf16.msra.mxu0 0
    %792 = vmatprep.subr.bf16.mxu0 0
    %793 = vmatpush1.bf16.msra.mxu0 0
    %794 = vmatprep.subr.bf16.mxu0 0
    %795 = vmatpush1.bf16.msra.mxu0 0
    %796 = vmatprep.subr.bf16.mxu0 0
    %797 = vmatpush1.bf16.msra.mxu0 0
    %798 = vmatprep.subr.bf16.mxu0 0
    %799 = vmatpush1.bf16.msra.mxu0 0
    %800 = vmatprep.subr.bf16.mxu0 0
    %801 = vmatpush1.bf16.msra.mxu0 0
    %802 = vmatprep.subr.bf16.mxu0 0
    %803 = vmatpush1.bf16.msra.mxu0 0
    %804 = vmatprep.subr.bf16.mxu0 0
    %805 = vmatpush1.bf16.msra.mxu0 0
    %806 = vmatprep.mubr.bf16.mxu0 0
    %807 = vmatmul.mubr.bf16.gmra.mrb[0].mxu0 %v772
    %v808 = vpop.f32.mrb[0].mxu0
    %v809 = vadd.f32 0.0, %v808
    %v810 = vpop.f32.mrb[0].mxu0
    %v811 = vpop.f32.mrb[0].mxu0
    %v812 = vpop.f32.mrb[0].mxu0
    %813 = vdwg.mxu0
    %v815 = vrot.slane %v809, 2
    %v817 = vadd.f32 %v154, %v815
    %v818 = vxor.u32 %v817, 2147483648
    %v819 = vmul.f32 %v818, 1.442695
    %v820 = vpow.pop %v819
    %v821 = vadd.f32 %v820, 1.0
    %v822 = vrcp.pop %v821
    %v823 = vmul.f32 1.0, %v822
    %v824 = vadd.f32 %v809, %v225
    %v826 = vrot.slane %v824, 2
    %827 = vrot.lane.b32.xlu0 %v826, 64
    %v828 = vpop.permute.xlu0 %827
    %v830 = vmul.f32 %v823, %v828
    %832 = vrot.lane.b32.xlu0 %v830, 64
    %v833 = vpop.permute.xlu0 %832
    %v835 = vadd.f32 %v154, %v833
    %v836 = vtanh.pop %v835
    %v837 = vsub.f32 1.0, %v823
    %839 = vrot.lane.b32.xlu0 %v836, 96
    %v840 = vpop.permute.xlu0 %839
    %v842 = vmul.f32 %v837, %v840
    %v843 = vrot.slane %v760, 6
    %v845 = vmul.f32 %v823, %v843
    %v846 = vadd.f32 %v842, %v845
    %848 = vrot.lane.b32.xlu0 %v846, 96
    %v849 = vpop.permute.xlu0 %848
    %851 = vst.msk [vmem:[#allocation2 + $0x8] sm:$0xc0] %vm511, %v849
    %v852 = vld [vmem:[#allocation2] sm:$0xff]
    %v853 = vld [vmem:[#allocation2 + $0x8] sm:$0xff]
    %v854 = vpack.c.bf16 %v853, %v852
    %v855 = vld [vmem:[%s5] sm:$0xf]
    %v856 = vld [vmem:[%s5 + $0x4] sm:$0xf]
    %v857 = vld [vmem:[%s5 + $0x8] sm:$0xf]
    %v858 = vld [vmem:[%s5 + $0xc] sm:$0xf]
    %v859 = vld [vmem:[%s6] sm:$0x1]
    %v861 = vlaneseq
    %v862 = vshrl.u32 %v861, 7
    %v863 = vsub.s32 0, %v862
    %v864 = vrot.slane %v859, %v863
    %v870 = vunpack.c.l.b16 %v855
    %v871 = vunpack.c.l.b16 %v856
    %v872 = vunpack.c.l.b16 %v857
    %v873 = vunpack.c.l.b16 %v858
    %v874 = vpack.c.b16 %v871, %v870
    %v875 = vpack.c.b16 %v873, %v872
    %v879 = vsel %vm112, %v854, 0
    %881 = vmatprep.subr.bf16.mxu0 0
    %882 = vmatpush1.bf16.msra.mxu0 %v874
    %883 = vmatprep.subr.bf16.mxu0 0
    %884 = vmatpush1.bf16.msra.mxu0 %v875
    %885 = vmatprep.subr.bf16.mxu0 0
    %886 = vmatpush1.bf16.msra.mxu0 0
    %887 = vmatprep.subr.bf16.mxu0 0
    %888 = vmatpush1.bf16.msra.mxu0 0
    %889 = vmatprep.subr.bf16.mxu0 0
    %890 = vmatpush1.bf16.msra.mxu0 0
    %891 = vmatprep.subr.bf16.mxu0 0
    %892 = vmatpush1.bf16.msra.mxu0 0
    %893 = vmatprep.subr.bf16.mxu0 0
    %894 = vmatpush1.bf16.msra.mxu0 0
    %895 = vmatprep.subr.bf16.mxu0 0
    %896 = vmatpush1.bf16.msra.mxu0 0
    %897 = vmatprep.subr.bf16.mxu0 0
    %898 = vmatpush1.bf16.msra.mxu0 0
    %899 = vmatprep.subr.bf16.mxu0 0
    %900 = vmatpush1.bf16.msra.mxu0 0
    %901 = vmatprep.subr.bf16.mxu0 0
    %902 = vmatpush1.bf16.msra.mxu0 0
    %903 = vmatprep.subr.bf16.mxu0 0
    %904 = vmatpush1.bf16.msra.mxu0 0
    %905 = vmatprep.subr.bf16.mxu0 0
    %906 = vmatpush1.bf16.msra.mxu0 0
    %907 = vmatprep.subr.bf16.mxu0 0
    %908 = vmatpush1.bf16.msra.mxu0 0
    %909 = vmatprep.subr.bf16.mxu0 0
    %910 = vmatpush1.bf16.msra.mxu0 0
    %911 = vmatprep.subr.bf16.mxu0 0
    %912 = vmatpush1.bf16.msra.mxu0 0
    %913 = vmatprep.mubr.bf16.mxu0 0
    %914 = vmatmul.mubr.bf16.gmra.mrb[0].mxu0 %v879
    %v915 = vpop.f32.mrb[0].mxu0
    %v916 = vadd.f32 %v864, %v915
    %v917 = vpop.f32.mrb[0].mxu0
    %v918 = vpop.f32.mrb[0].mxu0
    %v919 = vadd.f32 %v864, %v918
    %v920 = vpop.f32.mrb[0].mxu0
    %921 = vdwg.mxu0
    %v922 = vtanh.pop %v916
    %v923 = vtanh.pop %v919
    %v924 = vld [vmem:[%s7] sm:$0x1]
    %v926 = vlaneseq
    %v927 = vshrl.u32 %v926, 7
    %v928 = vsub.s32 0, %v927
    %v929 = vrot.slane %v924, %v928
    %v931 = vmul.f32 %v922, %v929
    %v932 = vmul.f32 %v923, %v929
    %vm933 = vcmask 523264
    %v934 = vsel %vm933, %v931, 0.0
    %935 = vadd.xlane.f32.xlu0 %v934
    %v936 = vpop.xlane.xlu0 %935
    %v937 = vsel %vm933, %v932, 0.0
    %938 = vadd.xlane.f32.xlu0 %v937
    %v939 = vpop.xlane.xlu0 %938
    %v940 = vld [vmem:[#allocation3] sm:$0x1]
    %v942 = vlaneseq
    %v943 = vshrl.u32 %v942, 7
    %v944 = vsub.s32 0, %v943
    %v945 = vrot.slane %v940, %v944
    %v947 = vadd.f32 %v936, %v945
    %v948 = vadd.f32 %v939, %v945
    %v950 = vrot.slane %v947, 2
    %v952 = vmax.f32 %v947, %v950
    %v953 = vrot.slane %v947, 4
    %v955 = vmax.f32 %v952, %v953
    %v956 = vrot.slane %v947, 6
    %v958 = vmax.f32 %v955, %v956
    %v959 = vmax.f32 %v958, %v948
    %v961 = vrot.slane %v948, 2
    %v963 = vmax.f32 %v959, %v961
    %v964 = vrot.slane %v948, 4
    %v966 = vmax.f32 %v963, %v964
    %v967 = vrot.slane %v948, 6
    %v969 = vmax.f32 %v966, %v967
    %v970 = vsub.f32 %v947, %v969
    %v971 = vmul.f32 %v970, 1.442695
    %v972 = vpow.pop %v971
    %v974 = vrot.slane %v969, 6
    %v976 = vsub.f32 %v947, %v974
    %v977 = vmul.f32 %v976, 1.442695
    %v978 = vpow.pop %v977
    %v979 = vrot.slane %v969, 4
    %v981 = vsub.f32 %v947, %v979
    %v982 = vmul.f32 %v981, 1.442695
    %v983 = vpow.pop %v982
    %v984 = vrot.slane %v969, 2
    %v986 = vsub.f32 %v947, %v984
    %v987 = vmul.f32 %v986, 1.442695
    %v988 = vpow.pop %v987
    %v989 = vsub.f32 %v948, %v969
    %v990 = vmul.f32 %v989, 1.442695
    %v991 = vpow.pop %v990
    %v992 = vsub.f32 %v948, %v974
    %v993 = vmul.f32 %v992, 1.442695
    %v994 = vpow.pop %v993
    %v995 = vsub.f32 %v948, %v979
    %v996 = vmul.f32 %v995, 1.442695
    %v997 = vpow.pop %v996
    %v998 = vsub.f32 %v948, %v984
    %v999 = vmul.f32 %v998, 1.442695
    %v1000 = vpow.pop %v999
    %v1002 = vrot.slane %v978, 2
    %v1004 = vadd.f32 %v972, %v1002
    %v1006 = vrot.slane %v983, 4
    %v1008 = vadd.f32 %v1004, %v1006
    %v1010 = vrot.slane %v988, 6
    %v1012 = vadd.f32 %v1008, %v1010
    %v1013 = vadd.f32 %v1012, %v991
    %v1015 = vrot.slane %v994, 2
    %v1017 = vadd.f32 %v1013, %v1015
    %v1019 = vrot.slane %v997, 4
    %v1021 = vadd.f32 %v1017, %v1019
    %v1023 = vrot.slane %v1000, 6
    %v1025 = vadd.f32 %v1021, %v1023
    %v1026 = vrcp.pop %v1025
    %v1027 = vmul.f32 %v972, %v1026
    %1029 = vset.pattern.permute.xlu0 0
    %1030 = vperm.xlu0 %1029, %v1027
    %v1031 = vpop.permute.xlu0 %1030
    %v1033 = vmul.f32 %v1031, %v246
    %v1034 = vadd.f32 %v1033, 0.0
    %v1036 = vrot.slane %v1026, 6
    %v1038 = vmul.f32 %v978, %v1036
    %1040 = vset.pattern.permute.xlu0 0
    %1041 = vperm.xlu0 %1040, %v1038
    %v1042 = vpop.permute.xlu0 %1041
    %v1044 = vmul.f32 %v1042, %v332
    %v1046 = vrot.slane %v1044, 2
    %v1048 = vadd.f32 %v1034, %v1046
    %v1049 = vrot.slane %v1026, 4
    %v1051 = vmul.f32 %v983, %v1049
    %1053 = vset.pattern.permute.xlu0 0
    %1054 = vperm.xlu0 %1053, %v1051
    %v1055 = vpop.permute.xlu0 %1054
    %v1057 = vmul.f32 %v1055, %v419
    %v1059 = vrot.slane %v1057, 4
    %v1061 = vadd.f32 %v1048, %v1059
    %v1062 = vrot.slane %v1026, 2
    %v1064 = vmul.f32 %v988, %v1062
    %1066 = vset.pattern.permute.xlu0 0
    %1067 = vperm.xlu0 %1066, %v1064
    %v1068 = vpop.permute.xlu0 %1067
    %v1070 = vmul.f32 %v1068, %v506
    %v1072 = vrot.slane %v1070, 6
    %v1074 = vadd.f32 %v1061, %v1072
    %v1075 = vmul.f32 %v991, %v1026
    %1077 = vset.pattern.permute.xlu0 0
    %1078 = vperm.xlu0 %1077, %v1075
    %v1079 = vpop.permute.xlu0 %1078
    %v1081 = vmul.f32 %v1079, %v589
    %v1082 = vadd.f32 %v1074, %v1081
    %v1083 = vmul.f32 %v994, %v1036
    %1085 = vset.pattern.permute.xlu0 0
    %1086 = vperm.xlu0 %1085, %v1083
    %v1087 = vpop.permute.xlu0 %1086
    %v1089 = vmul.f32 %v1087, %v674
    %v1091 = vrot.slane %v1089, 2
    %v1093 = vadd.f32 %v1082, %v1091
    %v1094 = vmul.f32 %v997, %v1049
    %1096 = vset.pattern.permute.xlu0 0
    %1097 = vperm.xlu0 %1096, %v1094
    %v1098 = vpop.permute.xlu0 %1097
    %v1100 = vmul.f32 %v1098, %v760
    %v1102 = vrot.slane %v1100, 4
    %v1104 = vadd.f32 %v1093, %v1102
    %v1105 = vmul.f32 %v1000, %v1062
    %1107 = vset.pattern.permute.xlu0 0
    %1108 = vperm.xlu0 %1107, %v1105
    %v1109 = vpop.permute.xlu0 %1108
    %v1111 = vmul.f32 %v1109, %v846
    %v1113 = vrot.slane %v1111, 6
    %v1115 = vadd.f32 %v1104, %v1113
    %v1116 = vmul.f32 %v1115, %v1115
    %1118 = vrot.lane.b32.xlu0 %v1116, 96
    %v1119 = vpop.permute.xlu0 %1118
    %v1121 = vsel %vm251, %v1119, 0.0
    %1122 = vadd.xlane.f32.xlu0 %v1121
    %v1123 = vpop.xlane.xlu0 %1122
    %v1124 = vmax.f32 %v1123, 1e-24
    %v1125 = vrsqrt.pop %v1124
    %v1126 = vmul.f32 %v1115, %v1125
    %1128 = vrot.lane.b32.xlu0 %v1126, 96
    %v1129 = vpop.permute.xlu0 %1128
    %1131 = vst.msk [vmem:[#allocation10] sm:$0x3] %vm251, %v1129
    // Predicated region
    $region50: #{tpu_custom_call.1} parent=1 // pred_check
      _
    $region51: #{tpu_custom_call.1} parent=1 // pred_check_branch
      %1133 = sbr.rel (0) target = $region53
    $region52: #{tpu_custom_call.1} parent=1 // pred_region
      %s1135 = ssub.s32 32, 32
      %1136 = vsyncadd [#allocation6], %s1135
      %s1138 = sshll.u32 [#allocation10], 4
      %s1139 = int_to_ptr.vmem [resolvable:$true] %s1138
      %1141 = dma.vmem_to_hbm [thread:$0]  %s1139, 32, %s9, [#allocation6]
    $region53: #{tpu_custom_call.1} parent=1 // pred_fallthru
      _
    // Predicated region
    $region54: #{tpu_custom_call.1} parent=1 // pred_check
      _
    $region55: #{tpu_custom_call.1} parent=1 // pred_check_branch
      %1143 = sbr.rel (0) target = $region57
    $region56: #{tpu_custom_call.1} parent=1 // pred_region
      %1144 = dma.done [#allocation6], 32
    $region57: #{tpu_custom_call.1} parent=1 // pred_fallthru
      _
    %1145 = vsyncpa [#allocation5], 1
    %1146 = vsyncpa [#allocation8], 1
    %1147 = vsyncpa [#allocation6], 1

</llo_original>
